<compile_context>
chip_gen: v5e
topology: v5e:2x2
jax: 0.10.0
libtpu: 0.0.40
codegen_flags: <defaults>
</compile_context>

<pallas_src>
import jax
import jax.numpy as jnp
from jax.experimental import pallas as pl
from jax.experimental.pallas import tpu as pltpu

MASK_EPS = 1e-5
LN_EPS = 1e-5
OUT_LANES = 128   # lane-dense packed output width


# ---------------------------------------------------------------- kernel -----

def make_selector2_kernel(dilations, kernel_size, L, M, F):
    """L = sequence length, M = Bt*L rows per grid step, F = filters."""
    n_blocks = len(dilations)
    # distinct nonzero sequence-index shifts needed by any block's taps
    shifts = sorted({j * d - d * (kernel_size - 1) // 2
                     for d in dilations for j in range(kernel_size)} - {0})

    def kernel(x_ref, w1_ref, wcat_ref, bcat_ref, gamma_ref, beta_ref,
               w2_ref, alpha_ref, b2_ref, o_ref):
        x = x_ref[...]                                     # (M, I) f32

        # ----- mask: count of inputs >= 1e-5 (on un-quantized f32 inputs) ---
        cnt = jnp.sum((x >= MASK_EPS).astype(jnp.float32), axis=-1,
                      keepdims=True)                       # (M, 1)

        # ----- hoisted row-position iota + per-shift tap-validity masks -----
        # rows are Bt contiguous sequences of length L; pos = index within seq
        pos = jax.lax.broadcasted_iota(jnp.int32, (M, F), 0) % L
        valid = {s: (pos + s >= 0) & (pos + s < L) for s in shifts}

        # ----- dense1 (no bias): bf16 MXU operands, f32 accumulation --------
        h = jnp.dot(x.astype(jnp.bfloat16), w1_ref[...],
                    preferred_element_type=jnp.float32)    # (M, F) f32

        inv_F = 1.0 / float(F)

        # ----- 6x ResidualGatedConv1D, statically unrolled; h stays resident
        for i in range(n_blocks):
            d = dilations[i]
            pad = d * (kernel_size - 1) // 2
            conv = None
            for j in range(kernel_size):
                s = j * d - pad                            # static tap shift
                if s == 0:
                    tap = h
                else:
                    # tap[r] = h[r + s] within the same sequence, else 0
                    rolled = pltpu.roll(h, shift=(-s) % M, axis=0)   # XLU
                    tap = jnp.where(valid[s], rolled, 0.0)
                part = jnp.dot(tap.astype(jnp.bfloat16),
                               wcat_ref[i * kernel_size + j],
                               preferred_element_type=jnp.float32)   # (M, 2F)
                conv = part if conv is None else conv + part
            conv = conv + bcat_ref[i][None, :]
            gate = jax.nn.sigmoid(conv[:, F:])                       # EUP
            val = conv[:, :F] * gate
            # single-pass LayerNorm over channels (biased variance, eps=1e-5)
            s1 = jnp.sum(val, axis=-1, keepdims=True)
            s2 = jnp.sum(val * val, axis=-1, keepdims=True)
            mu = s1 * inv_F
            var = jnp.maximum(s2 * inv_F - mu * mu, 0.0)
            normed = (val - mu) * jax.lax.rsqrt(var + LN_EPS)
            normed = normed * gamma_ref[i][None, :] + beta_ref[i][None, :]
            h = h + alpha_ref[i] * normed

        # ----- dense2 + sigmoid: cross-lane reduce (f32), not an (F,1) push --
        logit = jnp.sum(h * w2_ref[0][None, :], axis=-1, keepdims=True) + b2_ref[0]
        sig = jax.nn.sigmoid(logit)                                  # (M, 1)

        # ----- lane-dense packed output: col0 = prob, col1 = mask count -----
        lane = jax.lax.broadcasted_iota(jnp.int32, (M, OUT_LANES), 1)
        o_ref[...] = jnp.where(lane == 0, sig, jnp.where(lane == 1, cnt, 0.0))

    return kernel


# --------------------------------------------------------------- tiling ------

def _choose_batch_tile(B, L, target_rows=256):
    """Largest Bt dividing B with Bt*L <= target_rows (MXU fill / vreg cap),
    preferring >= 2 grid steps so v7x's 2 TensorCores both get work."""
    divisors = [d for d in range(1, B + 1) if B % d == 0]
    fits = [d for d in divisors if d * L <= target_rows and (d * L) % 8 == 0]
    if not fits:
        return B          # full-array block always satisfies the (8,128) rule
    two_step = [d for d in fits if B // d >= 2]
    return max(two_step) if two_step else max(fits)


# ---------------------------------------------------------------- wrapper ----

def selector2_forward(x, w1, block_params, w2, b2, dilations, kernel_size):
    B, L, I = x.shape
    F = w1.shape[1]
    K = kernel_size
    NB = len(dilations)

    Bt = _choose_batch_tile(B, L)
    M = Bt * L
    G = B // Bt

    # Plain-JAX glue: per (block, tap) weight Wj = [wv[j] | wg[j]] of shape
    # (F, 2F) (columns ordered value|gate), stacked to (NB*K, F, 2F) in bf16
    # so each conv is K tiny bf16 MXU pushes accumulated in f32.
    wcat_l, bcat_l, gamma_l, beta_l, alpha_l = [], [], [], [], []
    for (wv, wg, bv, bg, gamma, beta, alpha) in block_params:
        for j in range(K):
            wcat_l.append(jnp.concatenate([wv[j], wg[j]], axis=1))   # (F, 2F)
        bcat_l.append(jnp.concatenate([bv, bg]))
        gamma_l.append(gamma)
        beta_l.append(beta)
        alpha_l.append(alpha.reshape(()))
    wcat = jnp.stack(wcat_l).astype(jnp.bfloat16)   # (NB*K, F, 2F) bf16
    bcat = jnp.stack(bcat_l)                        # (NB, 2F) f32
    gammas = jnp.stack(gamma_l)                     # (NB, F) f32
    betas = jnp.stack(beta_l)                       # (NB, F) f32
    alphas = jnp.stack(alpha_l)                     # (NB,) f32
    w1_b = w1.astype(jnp.bfloat16)                  # (I, F) bf16
    w2row = w2.T                                    # (1, F) f32

    x2d = x.reshape(B * L, I)                       # rows = contiguous seqs

    vmem = pl.BlockSpec(memory_space=pltpu.MemorySpace.VMEM)
    smem = pl.BlockSpec(memory_space=pltpu.MemorySpace.SMEM)

    slab = pl.pallas_call(
        make_selector2_kernel(tuple(dilations), K, L, M, F),
        out_shape=jax.ShapeDtypeStruct((B * L, OUT_LANES), jnp.float32),
        grid=(G,),
        in_specs=[
            pl.BlockSpec((M, I), lambda b: (b, 0)),   # x rows, per-tile block
            vmem,   # w1 (bf16)
            vmem,   # wcat (bf16)
            vmem,   # bcat
            vmem,   # gammas
            vmem,   # betas
            vmem,   # w2row
            smem,   # alphas
            smem,   # b2
        ],
        out_specs=pl.BlockSpec((M, OUT_LANES), lambda b: (b, 0)),
        compiler_params=pltpu.CompilerParams(
            dimension_semantics=("parallel",)),
    )(x2d, w1_b, wcat, bcat, gammas, betas, w2row, alphas, b2)

    slab = slab.reshape(B, L, OUT_LANES)
    out = slab[:, :, 0:1]             # (B, L, 1)
    mask = slab[:, :, 1] > 0.0        # (B, L) bool
    return out, mask


# ------------------------------------------------------------- reference -----

def selector2_reference(x, w1, block_params, w2, b2, dilations, kernel_size):
    """Pure-JAX f32 reference (same parameterization) for correctness check."""
    mask = jnp.sum(x >= MASK_EPS, axis=-1) > 0
    h = x @ w1
    L = h.shape[1]
    for (wv, wg, bv, bg, gamma, beta, alpha), d in zip(block_params, dilations):
        pad = d * (kernel_size - 1) // 2
        hp = jnp.pad(h, ((0, 0), (pad, pad), (0, 0)))
        cv = sum(hp[:, j * d:j * d + L, :] @ wv[j] for j in range(kernel_size)) + bv
        cg = sum(hp[:, j * d:j * d + L, :] @ wg[j] for j in range(kernel_size)) + bg
        gate = jax.nn.sigmoid(cg)
        val = cv * gate
        mu = val.mean(-1, keepdims=True)
        var = ((val - mu) ** 2).mean(-1, keepdims=True)
        normed = (val - mu) * jax.lax.rsqrt(var + LN_EPS) * gamma + beta
        h = h + alpha[0] * normed
    out = jax.nn.sigmoid(h @ w2 + b2)
    return out, mask


# ------------------------------------------------------------------- main ----

if __name__ == "__main__":
    B, L = 2, 16
    INPUT_SIZE, FILTERS, KSIZE = 64, 32, 3
    DILATIONS = (1, 2, 4, 8, 1, 1)

    key = jax.random.PRNGKey(0)
    keys = jax.random.split(key, 16)

    x = jax.random.normal(keys[0], (B, L, INPUT_SIZE), jnp.float32)
    # zero a few rows so the mask is non-trivial
    x = x.at[1, -3:, :].set(0.0)

    w1 = 0.05 * jax.random.normal(keys[1], (INPUT_SIZE, FILTERS), jnp.float32)

    block_params = []
    for i in range(len(DILATIONS)):
        kk = jax.random.split(keys[2 + i], 4)
        wv = 0.05 * jax.random.normal(kk[0], (KSIZE, FILTERS, FILTERS), jnp.float32)
        wg = 0.05 * jax.random.normal(kk[1], (KSIZE, FILTERS, FILTERS), jnp.float32)
        bv = 0.01 * jax.random.normal(kk[2], (FILTERS,), jnp.float32)
        bg = 0.01 * jax.random.normal(kk[3], (FILTERS,), jnp.float32)
        gamma = jnp.ones((FILTERS,), jnp.float32)        # PyTorch LayerNorm default
        beta = jnp.zeros((FILTERS,), jnp.float32)
        # PyTorch inits alpha to 0 (block -> identity); use a deterministic
        # nonzero value so the gated-conv compute actually affects the output.
        alpha = jnp.full((1,), 0.25 + 0.05 * i, jnp.float32)
        block_params.append((wv, wg, bv, bg, gamma, beta, alpha))

    w2 = 0.1 * jax.random.normal(keys[10], (FILTERS, 1), jnp.float32)
    b2 = jnp.full((1,), 0.03, jnp.float32)

    out, mask = selector2_forward(x, w1, block_params, w2, b2, DILATIONS, KSIZE)
    out = jax.block_until_ready(out)
    mask = jax.block_until_ready(mask)

    assert out.shape == (B, L, 1) and out.dtype == jnp.float32
    assert mask.shape == (B, L) and mask.dtype == jnp.bool_

    # sanity check vs pure-JAX f32 reference.  Tolerance reflects bf16 MXU
    # operands (f32 accumulation) in the kernel; mask must match exactly.
    ref_out, ref_mask = selector2_reference(
        x, w1, block_params, w2, b2, DILATIONS, KSIZE)
    assert bool(jnp.array_equal(mask, ref_mask))
    assert bool(jnp.allclose(out, ref_out, atol=5e-3, rtol=5e-3))

    print("KERNEL_OK")
</pallas_src>

<mosaic_0001>
module attributes {stable_mosaic.version = 11 : i64} {
  func.func @kernel(%arg0: i32, %arg1: memref<16x64xf32, #tpu.memory_space<vmem>>, %arg2: memref<64x32xbf16, #tpu.memory_space<vmem>>, %arg3: memref<18x32x64xbf16, #tpu.memory_space<vmem>>, %arg4: memref<6x64xf32, #tpu.memory_space<vmem>>, %arg5: memref<6x32xf32, #tpu.memory_space<vmem>>, %arg6: memref<6x32xf32, #tpu.memory_space<vmem>>, %arg7: memref<1x32xf32, #tpu.memory_space<vmem>>, %arg8: memref<6xf32, #tpu.memory_space<smem>>, %arg9: memref<1xf32, #tpu.memory_space<smem>>, %arg10: memref<16x128xf32, #tpu.memory_space<vmem>>) attributes {dimension_semantics = [#tpu.dimension_semantics<parallel>], iteration_bounds = array<i64: 2>, scalar_prefetch = 0 : i64, scratch_operands = 0 : i64, tpu.core_type = #tpu.core_type<tc>, window_params = [{transform_indices = @transform_0, window_bounds = array<i64: 16, 64>}, {pipeline_mode = #tpu.pipeline_mode<synchronous>, transform_indices = @transform_1, window_bounds = array<i64: 64, 32>}, {pipeline_mode = #tpu.pipeline_mode<synchronous>, transform_indices = @transform_2, window_bounds = array<i64: 18, 32, 64>}, {pipeline_mode = #tpu.pipeline_mode<synchronous>, transform_indices = @transform_3, window_bounds = array<i64: 6, 64>}, {pipeline_mode = #tpu.pipeline_mode<synchronous>, transform_indices = @transform_4, window_bounds = array<i64: 6, 32>}, {pipeline_mode = #tpu.pipeline_mode<synchronous>, transform_indices = @transform_5, window_bounds = array<i64: 6, 32>}, {pipeline_mode = #tpu.pipeline_mode<synchronous>, transform_indices = @transform_6, window_bounds = array<i64: 1, 32>}, {transform_indices = @transform_7, window_bounds = array<i64: 6>}, {transform_indices = @transform_8, window_bounds = array<i64: 1>}, {transform_indices = @transform_9, window_bounds = array<i64: 16, 128>}]} {
    %c0 = arith.constant 0 : index
    %c0_0 = arith.constant 0 : index
    %0 = vector.load %arg1[%c0, %c0_0] : memref<16x64xf32, #tpu.memory_space<vmem>>, vector<16x64xf32>
    %cst = arith.constant 9.99999974E-6 : f32
    %1 = vector.broadcast %cst : f32 to vector<16x64xf32>
    %2 = arith.cmpf oge, %0, %1 : vector<16x64xf32>
    %3 = arith.extui %2 : vector<16x64xi1> to vector<16x64xi32>
    %4 = arith.sitofp %3 : vector<16x64xi32> to vector<16x64xf32>
    %cst_1 = arith.constant dense<0.000000e+00> : vector<16xf32>
    %5 = vector.multi_reduction <add>, %4, %cst_1 [1] : vector<16x64xf32> to vector<16xf32>
    %6 = vector.shape_cast %5 : vector<16xf32> to vector<16x1xf32>
    %7 = tpu.iota {dimensions = array<i32: 0>} : vector<16x32xi32>
    %c16_i32 = arith.constant 16 : i32
    %c0_i32 = arith.constant 0 : i32
    %8 = arith.cmpi eq, %c16_i32, %c0_i32 : i32
    %c1_i32 = arith.constant 1 : i32
    %9 = arith.select %8, %c1_i32, %c16_i32 : i32
    %10 = vector.broadcast %9 : i32 to vector<16x32xi32>
    %11 = arith.remsi %7, %10 : vector<16x32xi32>
    %c0_i32_2 = arith.constant 0 : i32
    %12 = vector.broadcast %c0_i32_2 : i32 to vector<16x32xi32>
    %13 = arith.cmpi ne, %11, %12 : vector<16x32xi32>
    %c0_i32_3 = arith.constant 0 : i32
    %14 = vector.broadcast %c0_i32_3 : i32 to vector<16x32xi32>
    %15 = arith.cmpi slt, %11, %14 : vector<16x32xi32>
    %c0_i32_4 = arith.constant 0 : i32
    %16 = arith.cmpi slt, %9, %c0_i32_4 : i32
    %17 = vector.broadcast %16 : i1 to vector<16x32xi1>
    %18 = vector.broadcast %17 : vector<16x32xi1> to vector<16x32xi1>
    %19 = arith.xori %15, %18 : vector<16x32xi1>
    %20 = arith.andi %19, %13 : vector<16x32xi1>
    %21 = vector.broadcast %9 : i32 to vector<16x32xi32>
    %22 = arith.addi %11, %21 : vector<16x32xi32>
    %23 = arith.select %20, %22, %11 : vector<16x32xi1>, vector<16x32xi32>
    %c-8_i32 = arith.constant -8 : i32
    %24 = vector.broadcast %c-8_i32 : i32 to vector<16x32xi32>
    %25 = arith.addi %23, %24 : vector<16x32xi32>
    %c0_i32_5 = arith.constant 0 : i32
    %26 = vector.broadcast %c0_i32_5 : i32 to vector<16x32xi32>
    %27 = arith.cmpi sge, %25, %26 : vector<16x32xi32>
    %c-8_i32_6 = arith.constant -8 : i32
    %28 = vector.broadcast %c-8_i32_6 : i32 to vector<16x32xi32>
    %29 = arith.addi %23, %28 : vector<16x32xi32>
    %c16_i32_7 = arith.constant 16 : i32
    %30 = vector.broadcast %c16_i32_7 : i32 to vector<16x32xi32>
    %31 = arith.cmpi slt, %29, %30 : vector<16x32xi32>
    %32 = arith.andi %27, %31 : vector<16x32xi1>
    %c-4_i32 = arith.constant -4 : i32
    %33 = vector.broadcast %c-4_i32 : i32 to vector<16x32xi32>
    %34 = arith.addi %23, %33 : vector<16x32xi32>
    %c0_i32_8 = arith.constant 0 : i32
    %35 = vector.broadcast %c0_i32_8 : i32 to vector<16x32xi32>
    %36 = arith.cmpi sge, %34, %35 : vector<16x32xi32>
    %c-4_i32_9 = arith.constant -4 : i32
    %37 = vector.broadcast %c-4_i32_9 : i32 to vector<16x32xi32>
    %38 = arith.addi %23, %37 : vector<16x32xi32>
    %c16_i32_10 = arith.constant 16 : i32
    %39 = vector.broadcast %c16_i32_10 : i32 to vector<16x32xi32>
    %40 = arith.cmpi slt, %38, %39 : vector<16x32xi32>
    %41 = arith.andi %36, %40 : vector<16x32xi1>
    %c-2_i32 = arith.constant -2 : i32
    %42 = vector.broadcast %c-2_i32 : i32 to vector<16x32xi32>
    %43 = arith.addi %23, %42 : vector<16x32xi32>
    %c0_i32_11 = arith.constant 0 : i32
    %44 = vector.broadcast %c0_i32_11 : i32 to vector<16x32xi32>
    %45 = arith.cmpi sge, %43, %44 : vector<16x32xi32>
    %c-2_i32_12 = arith.constant -2 : i32
    %46 = vector.broadcast %c-2_i32_12 : i32 to vector<16x32xi32>
    %47 = arith.addi %23, %46 : vector<16x32xi32>
    %c16_i32_13 = arith.constant 16 : i32
    %48 = vector.broadcast %c16_i32_13 : i32 to vector<16x32xi32>
    %49 = arith.cmpi slt, %47, %48 : vector<16x32xi32>
    %50 = arith.andi %45, %49 : vector<16x32xi1>
    %c-1_i32 = arith.constant -1 : i32
    %51 = vector.broadcast %c-1_i32 : i32 to vector<16x32xi32>
    %52 = arith.addi %23, %51 : vector<16x32xi32>
    %c0_i32_14 = arith.constant 0 : i32
    %53 = vector.broadcast %c0_i32_14 : i32 to vector<16x32xi32>
    %54 = arith.cmpi sge, %52, %53 : vector<16x32xi32>
    %c-1_i32_15 = arith.constant -1 : i32
    %55 = vector.broadcast %c-1_i32_15 : i32 to vector<16x32xi32>
    %56 = arith.addi %23, %55 : vector<16x32xi32>
    %c16_i32_16 = arith.constant 16 : i32
    %57 = vector.broadcast %c16_i32_16 : i32 to vector<16x32xi32>
    %58 = arith.cmpi slt, %56, %57 : vector<16x32xi32>
    %59 = arith.andi %54, %58 : vector<16x32xi1>
    %c1_i32_17 = arith.constant 1 : i32
    %60 = vector.broadcast %c1_i32_17 : i32 to vector<16x32xi32>
    %61 = arith.addi %23, %60 : vector<16x32xi32>
    %c0_i32_18 = arith.constant 0 : i32
    %62 = vector.broadcast %c0_i32_18 : i32 to vector<16x32xi32>
    %63 = arith.cmpi sge, %61, %62 : vector<16x32xi32>
    %c1_i32_19 = arith.constant 1 : i32
    %64 = vector.broadcast %c1_i32_19 : i32 to vector<16x32xi32>
    %65 = arith.addi %23, %64 : vector<16x32xi32>
    %c16_i32_20 = arith.constant 16 : i32
    %66 = vector.broadcast %c16_i32_20 : i32 to vector<16x32xi32>
    %67 = arith.cmpi slt, %65, %66 : vector<16x32xi32>
    %68 = arith.andi %63, %67 : vector<16x32xi1>
    %c2_i32 = arith.constant 2 : i32
    %69 = vector.broadcast %c2_i32 : i32 to vector<16x32xi32>
    %70 = arith.addi %23, %69 : vector<16x32xi32>
    %c0_i32_21 = arith.constant 0 : i32
    %71 = vector.broadcast %c0_i32_21 : i32 to vector<16x32xi32>
    %72 = arith.cmpi sge, %70, %71 : vector<16x32xi32>
    %c2_i32_22 = arith.constant 2 : i32
    %73 = vector.broadcast %c2_i32_22 : i32 to vector<16x32xi32>
    %74 = arith.addi %23, %73 : vector<16x32xi32>
    %c16_i32_23 = arith.constant 16 : i32
    %75 = vector.broadcast %c16_i32_23 : i32 to vector<16x32xi32>
    %76 = arith.cmpi slt, %74, %75 : vector<16x32xi32>
    %77 = arith.andi %72, %76 : vector<16x32xi1>
    %c4_i32 = arith.constant 4 : i32
    %78 = vector.broadcast %c4_i32 : i32 to vector<16x32xi32>
    %79 = arith.addi %23, %78 : vector<16x32xi32>
    %c0_i32_24 = arith.constant 0 : i32
    %80 = vector.broadcast %c0_i32_24 : i32 to vector<16x32xi32>
    %81 = arith.cmpi sge, %79, %80 : vector<16x32xi32>
    %c4_i32_25 = arith.constant 4 : i32
    %82 = vector.broadcast %c4_i32_25 : i32 to vector<16x32xi32>
    %83 = arith.addi %23, %82 : vector<16x32xi32>
    %c16_i32_26 = arith.constant 16 : i32
    %84 = vector.broadcast %c16_i32_26 : i32 to vector<16x32xi32>
    %85 = arith.cmpi slt, %83, %84 : vector<16x32xi32>
    %86 = arith.andi %81, %85 : vector<16x32xi1>
    %c8_i32 = arith.constant 8 : i32
    %87 = vector.broadcast %c8_i32 : i32 to vector<16x32xi32>
    %88 = arith.addi %23, %87 : vector<16x32xi32>
    %c0_i32_27 = arith.constant 0 : i32
    %89 = vector.broadcast %c0_i32_27 : i32 to vector<16x32xi32>
    %90 = arith.cmpi sge, %88, %89 : vector<16x32xi32>
    %c8_i32_28 = arith.constant 8 : i32
    %91 = vector.broadcast %c8_i32_28 : i32 to vector<16x32xi32>
    %92 = arith.addi %23, %91 : vector<16x32xi32>
    %c16_i32_29 = arith.constant 16 : i32
    %93 = vector.broadcast %c16_i32_29 : i32 to vector<16x32xi32>
    %94 = arith.cmpi slt, %92, %93 : vector<16x32xi32>
    %95 = arith.andi %90, %94 : vector<16x32xi1>
    %96 = arith.truncf %0 : vector<16x64xf32> to vector<16x64xbf16>
    %c0_30 = arith.constant 0 : index
    %c0_31 = arith.constant 0 : index
    %97 = vector.load %arg2[%c0_30, %c0_31] : memref<64x32xbf16, #tpu.memory_space<vmem>>, vector<64x32xbf16>
    %cst_32 = arith.constant dense<0.000000e+00> : vector<16x32xf32>
    %98 = tpu.matmul %96, %97, %cst_32 {dimension_numbers = #tpu.dot_dimension_numbers<[1], [0], [0], [1], [0, 0, 1, 1], [], []>} : vector<16x64xbf16>, vector<64x32xbf16>, vector<16x32xf32> -> vector<16x32xf32>
    %c1_i32_33 = arith.constant 1 : i32
    %99 = tpu.dynamic_rotate %98 by %c1_i32_33 dim 0 : vector<16x32xf32>, i32 -> vector<16x32xf32>
    %cst_34 = arith.constant 0.000000e+00 : f32
    %100 = vector.broadcast %cst_34 : f32 to vector<16x32xf32>
    %101 = arith.select %59, %99, %100 : vector<16x32xi1>, vector<16x32xf32>
    %102 = arith.truncf %101 : vector<16x32xf32> to vector<16x32xbf16>
    %c0_35 = arith.constant 0 : index
    %c0_36 = arith.constant 0 : index
    %c0_37 = arith.constant 0 : index
    %103 = vector.load %arg3[%c0_35, %c0_36, %c0_37] : memref<18x32x64xbf16, #tpu.memory_space<vmem>>, vector<1x32x64xbf16>
    %104 = vector.shape_cast %103 : vector<1x32x64xbf16> to vector<32x64xbf16>
    %cst_38 = arith.constant dense<0.000000e+00> : vector<16x64xf32>
    %105 = tpu.matmul %102, %104, %cst_38 {dimension_numbers = #tpu.dot_dimension_numbers<[1], [0], [0], [1], [0, 0, 1, 1], [], []>} : vector<16x32xbf16>, vector<32x64xbf16>, vector<16x64xf32> -> vector<16x64xf32>
    %106 = arith.truncf %98 : vector<16x32xf32> to vector<16x32xbf16>
    %c1 = arith.constant 1 : index
    %c0_39 = arith.constant 0 : index
    %c0_40 = arith.constant 0 : index
    %107 = vector.load %arg3[%c1, %c0_39, %c0_40] : memref<18x32x64xbf16, #tpu.memory_space<vmem>>, vector<1x32x64xbf16>
    %108 = vector.shape_cast %107 : vector<1x32x64xbf16> to vector<32x64xbf16>
    %cst_41 = arith.constant dense<0.000000e+00> : vector<16x64xf32>
    %109 = tpu.matmul %106, %108, %cst_41 {dimension_numbers = #tpu.dot_dimension_numbers<[1], [0], [0], [1], [0, 0, 1, 1], [], []>} : vector<16x32xbf16>, vector<32x64xbf16>, vector<16x64xf32> -> vector<16x64xf32>
    %110 = arith.addf %105, %109 : vector<16x64xf32>
    %c15_i32 = arith.constant 15 : i32
    %111 = tpu.dynamic_rotate %98 by %c15_i32 dim 0 : vector<16x32xf32>, i32 -> vector<16x32xf32>
    %cst_42 = arith.constant 0.000000e+00 : f32
    %112 = vector.broadcast %cst_42 : f32 to vector<16x32xf32>
    %113 = arith.select %68, %111, %112 : vector<16x32xi1>, vector<16x32xf32>
    %114 = arith.truncf %113 : vector<16x32xf32> to vector<16x32xbf16>
    %c2 = arith.constant 2 : index
    %c0_43 = arith.constant 0 : index
    %c0_44 = arith.constant 0 : index
    %115 = vector.load %arg3[%c2, %c0_43, %c0_44] : memref<18x32x64xbf16, #tpu.memory_space<vmem>>, vector<1x32x64xbf16>
    %116 = vector.shape_cast %115 : vector<1x32x64xbf16> to vector<32x64xbf16>
    %cst_45 = arith.constant dense<0.000000e+00> : vector<16x64xf32>
    %117 = tpu.matmul %114, %116, %cst_45 {dimension_numbers = #tpu.dot_dimension_numbers<[1], [0], [0], [1], [0, 0, 1, 1], [], []>} : vector<16x32xbf16>, vector<32x64xbf16>, vector<16x64xf32> -> vector<16x64xf32>
    %118 = arith.addf %110, %117 : vector<16x64xf32>
    %c0_46 = arith.constant 0 : index
    %c0_47 = arith.constant 0 : index
    %119 = vector.load %arg4[%c0_46, %c0_47] : memref<6x64xf32, #tpu.memory_space<vmem>>, vector<1x64xf32>
    %120 = vector.shape_cast %119 : vector<1x64xf32> to vector<64xf32>
    %121 = vector.shape_cast %120 : vector<64xf32> to vector<1x64xf32>
    %122 = vector.broadcast %121 : vector<1x64xf32> to vector<16x64xf32>
    %123 = arith.addf %118, %122 : vector<16x64xf32>
    %124 = vector.extract_strided_slice %123 {offsets = [0, 32], sizes = [16, 32], strides = [1, 1]} : vector<16x64xf32> to vector<16x32xf32>
    %125 = arith.negf %124 : vector<16x32xf32>
    %126 = math.exp %125 : vector<16x32xf32>
    %cst_48 = arith.constant 1.000000e+00 : f32
    %127 = vector.broadcast %cst_48 : f32 to vector<16x32xf32>
    %128 = arith.addf %127, %126 : vector<16x32xf32>
    %129 = arith.divf %127, %128 : vector<16x32xf32>
    %130 = vector.extract_strided_slice %123 {offsets = [0, 0], sizes = [16, 32], strides = [1, 1]} : vector<16x64xf32> to vector<16x32xf32>
    %131 = arith.mulf %130, %129 : vector<16x32xf32>
    %cst_49 = arith.constant dense<0.000000e+00> : vector<16xf32>
    %132 = vector.multi_reduction <add>, %131, %cst_49 [1] : vector<16x32xf32> to vector<16xf32>
    %133 = vector.shape_cast %132 : vector<16xf32> to vector<16x1xf32>
    %134 = arith.mulf %131, %131 : vector<16x32xf32>
    %cst_50 = arith.constant dense<0.000000e+00> : vector<16xf32>
    %135 = vector.multi_reduction <add>, %134, %cst_50 [1] : vector<16x32xf32> to vector<16xf32>
    %136 = vector.shape_cast %135 : vector<16xf32> to vector<16x1xf32>
    %cst_51 = arith.constant 3.125000e-02 : f32
    %137 = vector.broadcast %cst_51 : f32 to vector<16x1xf32>
    %138 = arith.mulf %133, %137 : vector<16x1xf32>
    %cst_52 = arith.constant 3.125000e-02 : f32
    %139 = vector.broadcast %cst_52 : f32 to vector<16x1xf32>
    %140 = arith.mulf %136, %139 : vector<16x1xf32>
    %141 = arith.mulf %138, %138 : vector<16x1xf32>
    %142 = arith.subf %140, %141 : vector<16x1xf32>
    %cst_53 = arith.constant 0.000000e+00 : f32
    %143 = vector.broadcast %cst_53 : f32 to vector<16x1xf32>
    %144 = arith.maximumf %142, %143 : vector<16x1xf32>
    %145 = vector.broadcast %138 : vector<16x1xf32> to vector<16x32xf32>
    %146 = arith.subf %131, %145 : vector<16x32xf32>
    %cst_54 = arith.constant 9.99999974E-6 : f32
    %147 = vector.broadcast %cst_54 : f32 to vector<16x1xf32>
    %148 = arith.addf %144, %147 : vector<16x1xf32>
    %149 = math.rsqrt %148 : vector<16x1xf32>
    %150 = vector.broadcast %149 : vector<16x1xf32> to vector<16x32xf32>
    %151 = arith.mulf %146, %150 : vector<16x32xf32>
    %c0_55 = arith.constant 0 : index
    %c0_56 = arith.constant 0 : index
    %152 = vector.load %arg5[%c0_55, %c0_56] : memref<6x32xf32, #tpu.memory_space<vmem>>, vector<1x32xf32>
    %153 = vector.shape_cast %152 : vector<1x32xf32> to vector<32xf32>
    %154 = vector.shape_cast %153 : vector<32xf32> to vector<1x32xf32>
    %155 = vector.broadcast %154 : vector<1x32xf32> to vector<16x32xf32>
    %156 = arith.mulf %151, %155 : vector<16x32xf32>
    %c0_57 = arith.constant 0 : index
    %c0_58 = arith.constant 0 : index
    %157 = vector.load %arg6[%c0_57, %c0_58] : memref<6x32xf32, #tpu.memory_space<vmem>>, vector<1x32xf32>
    %158 = vector.shape_cast %157 : vector<1x32xf32> to vector<32xf32>
    %159 = vector.shape_cast %158 : vector<32xf32> to vector<1x32xf32>
    %160 = vector.broadcast %159 : vector<1x32xf32> to vector<16x32xf32>
    %161 = arith.addf %156, %160 : vector<16x32xf32>
    %c0_59 = arith.constant 0 : index
    %162 = memref.load %arg8[%c0_59] : memref<6xf32, #tpu.memory_space<smem>>
    %163 = vector.broadcast %162 : f32 to vector<16x32xf32>
    %164 = arith.mulf %163, %161 : vector<16x32xf32>
    %165 = arith.addf %98, %164 : vector<16x32xf32>
    %c2_i32_60 = arith.constant 2 : i32
    %166 = tpu.dynamic_rotate %165 by %c2_i32_60 dim 0 : vector<16x32xf32>, i32 -> vector<16x32xf32>
    %cst_61 = arith.constant 0.000000e+00 : f32
    %167 = vector.broadcast %cst_61 : f32 to vector<16x32xf32>
    %168 = arith.select %50, %166, %167 : vector<16x32xi1>, vector<16x32xf32>
    %169 = arith.truncf %168 : vector<16x32xf32> to vector<16x32xbf16>
    %c3 = arith.constant 3 : index
    %c0_62 = arith.constant 0 : index
    %c0_63 = arith.constant 0 : index
    %170 = vector.load %arg3[%c3, %c0_62, %c0_63] : memref<18x32x64xbf16, #tpu.memory_space<vmem>>, vector<1x32x64xbf16>
    %171 = vector.shape_cast %170 : vector<1x32x64xbf16> to vector<32x64xbf16>
    %cst_64 = arith.constant dense<0.000000e+00> : vector<16x64xf32>
    %172 = tpu.matmul %169, %171, %cst_64 {dimension_numbers = #tpu.dot_dimension_numbers<[1], [0], [0], [1], [0, 0, 1, 1], [], []>} : vector<16x32xbf16>, vector<32x64xbf16>, vector<16x64xf32> -> vector<16x64xf32>
    %173 = arith.truncf %165 : vector<16x32xf32> to vector<16x32xbf16>
    %c4 = arith.constant 4 : index
    %c0_65 = arith.constant 0 : index
    %c0_66 = arith.constant 0 : index
    %174 = vector.load %arg3[%c4, %c0_65, %c0_66] : memref<18x32x64xbf16, #tpu.memory_space<vmem>>, vector<1x32x64xbf16>
    %175 = vector.shape_cast %174 : vector<1x32x64xbf16> to vector<32x64xbf16>
    %cst_67 = arith.constant dense<0.000000e+00> : vector<16x64xf32>
    %176 = tpu.matmul %173, %175, %cst_67 {dimension_numbers = #tpu.dot_dimension_numbers<[1], [0], [0], [1], [0, 0, 1, 1], [], []>} : vector<16x32xbf16>, vector<32x64xbf16>, vector<16x64xf32> -> vector<16x64xf32>
    %177 = arith.addf %172, %176 : vector<16x64xf32>
    %c14_i32 = arith.constant 14 : i32
    %178 = tpu.dynamic_rotate %165 by %c14_i32 dim 0 : vector<16x32xf32>, i32 -> vector<16x32xf32>
    %cst_68 = arith.constant 0.000000e+00 : f32
    %179 = vector.broadcast %cst_68 : f32 to vector<16x32xf32>
    %180 = arith.select %77, %178, %179 : vector<16x32xi1>, vector<16x32xf32>
    %181 = arith.truncf %180 : vector<16x32xf32> to vector<16x32xbf16>
    %c5 = arith.constant 5 : index
    %c0_69 = arith.constant 0 : index
    %c0_70 = arith.constant 0 : index
    %182 = vector.load %arg3[%c5, %c0_69, %c0_70] : memref<18x32x64xbf16, #tpu.memory_space<vmem>>, vector<1x32x64xbf16>
    %183 = vector.shape_cast %182 : vector<1x32x64xbf16> to vector<32x64xbf16>
    %cst_71 = arith.constant dense<0.000000e+00> : vector<16x64xf32>
    %184 = tpu.matmul %181, %183, %cst_71 {dimension_numbers = #tpu.dot_dimension_numbers<[1], [0], [0], [1], [0, 0, 1, 1], [], []>} : vector<16x32xbf16>, vector<32x64xbf16>, vector<16x64xf32> -> vector<16x64xf32>
    %185 = arith.addf %177, %184 : vector<16x64xf32>
    %c1_72 = arith.constant 1 : index
    %c0_73 = arith.constant 0 : index
    %186 = vector.load %arg4[%c1_72, %c0_73] : memref<6x64xf32, #tpu.memory_space<vmem>>, vector<1x64xf32>
    %187 = vector.shape_cast %186 : vector<1x64xf32> to vector<64xf32>
    %188 = vector.shape_cast %187 : vector<64xf32> to vector<1x64xf32>
    %189 = vector.broadcast %188 : vector<1x64xf32> to vector<16x64xf32>
    %190 = arith.addf %185, %189 : vector<16x64xf32>
    %191 = vector.extract_strided_slice %190 {offsets = [0, 32], sizes = [16, 32], strides = [1, 1]} : vector<16x64xf32> to vector<16x32xf32>
    %192 = arith.negf %191 : vector<16x32xf32>
    %193 = math.exp %192 : vector<16x32xf32>
    %cst_74 = arith.constant 1.000000e+00 : f32
    %194 = vector.broadcast %cst_74 : f32 to vector<16x32xf32>
    %195 = arith.addf %194, %193 : vector<16x32xf32>
    %196 = arith.divf %194, %195 : vector<16x32xf32>
    %197 = vector.extract_strided_slice %190 {offsets = [0, 0], sizes = [16, 32], strides = [1, 1]} : vector<16x64xf32> to vector<16x32xf32>
    %198 = arith.mulf %197, %196 : vector<16x32xf32>
    %cst_75 = arith.constant dense<0.000000e+00> : vector<16xf32>
    %199 = vector.multi_reduction <add>, %198, %cst_75 [1] : vector<16x32xf32> to vector<16xf32>
    %200 = vector.shape_cast %199 : vector<16xf32> to vector<16x1xf32>
    %201 = arith.mulf %198, %198 : vector<16x32xf32>
    %cst_76 = arith.constant dense<0.000000e+00> : vector<16xf32>
    %202 = vector.multi_reduction <add>, %201, %cst_76 [1] : vector<16x32xf32> to vector<16xf32>
    %203 = vector.shape_cast %202 : vector<16xf32> to vector<16x1xf32>
    %cst_77 = arith.constant 3.125000e-02 : f32
    %204 = vector.broadcast %cst_77 : f32 to vector<16x1xf32>
    %205 = arith.mulf %200, %204 : vector<16x1xf32>
    %cst_78 = arith.constant 3.125000e-02 : f32
    %206 = vector.broadcast %cst_78 : f32 to vector<16x1xf32>
    %207 = arith.mulf %203, %206 : vector<16x1xf32>
    %208 = arith.mulf %205, %205 : vector<16x1xf32>
    %209 = arith.subf %207, %208 : vector<16x1xf32>
    %cst_79 = arith.constant 0.000000e+00 : f32
    %210 = vector.broadcast %cst_79 : f32 to vector<16x1xf32>
    %211 = arith.maximumf %209, %210 : vector<16x1xf32>
    %212 = vector.broadcast %205 : vector<16x1xf32> to vector<16x32xf32>
    %213 = arith.subf %198, %212 : vector<16x32xf32>
    %cst_80 = arith.constant 9.99999974E-6 : f32
    %214 = vector.broadcast %cst_80 : f32 to vector<16x1xf32>
    %215 = arith.addf %211, %214 : vector<16x1xf32>
    %216 = math.rsqrt %215 : vector<16x1xf32>
    %217 = vector.broadcast %216 : vector<16x1xf32> to vector<16x32xf32>
    %218 = arith.mulf %213, %217 : vector<16x32xf32>
    %c1_81 = arith.constant 1 : index
    %c0_82 = arith.constant 0 : index
    %219 = vector.load %arg5[%c1_81, %c0_82] : memref<6x32xf32, #tpu.memory_space<vmem>>, vector<1x32xf32>
    %220 = vector.shape_cast %219 : vector<1x32xf32> to vector<32xf32>
    %221 = vector.shape_cast %220 : vector<32xf32> to vector<1x32xf32>
    %222 = vector.broadcast %221 : vector<1x32xf32> to vector<16x32xf32>
    %223 = arith.mulf %218, %222 : vector<16x32xf32>
    %c1_83 = arith.constant 1 : index
    %c0_84 = arith.constant 0 : index
    %224 = vector.load %arg6[%c1_83, %c0_84] : memref<6x32xf32, #tpu.memory_space<vmem>>, vector<1x32xf32>
    %225 = vector.shape_cast %224 : vector<1x32xf32> to vector<32xf32>
    %226 = vector.shape_cast %225 : vector<32xf32> to vector<1x32xf32>
    %227 = vector.broadcast %226 : vector<1x32xf32> to vector<16x32xf32>
    %228 = arith.addf %223, %227 : vector<16x32xf32>
    %c1_85 = arith.constant 1 : index
    %229 = memref.load %arg8[%c1_85] : memref<6xf32, #tpu.memory_space<smem>>
    %230 = vector.broadcast %229 : f32 to vector<16x32xf32>
    %231 = arith.mulf %230, %228 : vector<16x32xf32>
    %232 = arith.addf %165, %231 : vector<16x32xf32>
    %c4_i32_86 = arith.constant 4 : i32
    %233 = tpu.dynamic_rotate %232 by %c4_i32_86 dim 0 : vector<16x32xf32>, i32 -> vector<16x32xf32>
    %cst_87 = arith.constant 0.000000e+00 : f32
    %234 = vector.broadcast %cst_87 : f32 to vector<16x32xf32>
    %235 = arith.select %41, %233, %234 : vector<16x32xi1>, vector<16x32xf32>
    %236 = arith.truncf %235 : vector<16x32xf32> to vector<16x32xbf16>
    %c6 = arith.constant 6 : index
    %c0_88 = arith.constant 0 : index
    %c0_89 = arith.constant 0 : index
    %237 = vector.load %arg3[%c6, %c0_88, %c0_89] : memref<18x32x64xbf16, #tpu.memory_space<vmem>>, vector<1x32x64xbf16>
    %238 = vector.shape_cast %237 : vector<1x32x64xbf16> to vector<32x64xbf16>
    %cst_90 = arith.constant dense<0.000000e+00> : vector<16x64xf32>
    %239 = tpu.matmul %236, %238, %cst_90 {dimension_numbers = #tpu.dot_dimension_numbers<[1], [0], [0], [1], [0, 0, 1, 1], [], []>} : vector<16x32xbf16>, vector<32x64xbf16>, vector<16x64xf32> -> vector<16x64xf32>
    %240 = arith.truncf %232 : vector<16x32xf32> to vector<16x32xbf16>
    %c7 = arith.constant 7 : index
    %c0_91 = arith.constant 0 : index
    %c0_92 = arith.constant 0 : index
    %241 = vector.load %arg3[%c7, %c0_91, %c0_92] : memref<18x32x64xbf16, #tpu.memory_space<vmem>>, vector<1x32x64xbf16>
    %242 = vector.shape_cast %241 : vector<1x32x64xbf16> to vector<32x64xbf16>
    %cst_93 = arith.constant dense<0.000000e+00> : vector<16x64xf32>
    %243 = tpu.matmul %240, %242, %cst_93 {dimension_numbers = #tpu.dot_dimension_numbers<[1], [0], [0], [1], [0, 0, 1, 1], [], []>} : vector<16x32xbf16>, vector<32x64xbf16>, vector<16x64xf32> -> vector<16x64xf32>
    %244 = arith.addf %239, %243 : vector<16x64xf32>
    %c12_i32 = arith.constant 12 : i32
    %245 = tpu.dynamic_rotate %232 by %c12_i32 dim 0 : vector<16x32xf32>, i32 -> vector<16x32xf32>
    %cst_94 = arith.constant 0.000000e+00 : f32
    %246 = vector.broadcast %cst_94 : f32 to vector<16x32xf32>
    %247 = arith.select %86, %245, %246 : vector<16x32xi1>, vector<16x32xf32>
    %248 = arith.truncf %247 : vector<16x32xf32> to vector<16x32xbf16>
    %c8 = arith.constant 8 : index
    %c0_95 = arith.constant 0 : index
    %c0_96 = arith.constant 0 : index
    %249 = vector.load %arg3[%c8, %c0_95, %c0_96] : memref<18x32x64xbf16, #tpu.memory_space<vmem>>, vector<1x32x64xbf16>
    %250 = vector.shape_cast %249 : vector<1x32x64xbf16> to vector<32x64xbf16>
    %cst_97 = arith.constant dense<0.000000e+00> : vector<16x64xf32>
    %251 = tpu.matmul %248, %250, %cst_97 {dimension_numbers = #tpu.dot_dimension_numbers<[1], [0], [0], [1], [0, 0, 1, 1], [], []>} : vector<16x32xbf16>, vector<32x64xbf16>, vector<16x64xf32> -> vector<16x64xf32>
    %252 = arith.addf %244, %251 : vector<16x64xf32>
    %c2_98 = arith.constant 2 : index
    %c0_99 = arith.constant 0 : index
    %253 = vector.load %arg4[%c2_98, %c0_99] : memref<6x64xf32, #tpu.memory_space<vmem>>, vector<1x64xf32>
    %254 = vector.shape_cast %253 : vector<1x64xf32> to vector<64xf32>
    %255 = vector.shape_cast %254 : vector<64xf32> to vector<1x64xf32>
    %256 = vector.broadcast %255 : vector<1x64xf32> to vector<16x64xf32>
    %257 = arith.addf %252, %256 : vector<16x64xf32>
    %258 = vector.extract_strided_slice %257 {offsets = [0, 32], sizes = [16, 32], strides = [1, 1]} : vector<16x64xf32> to vector<16x32xf32>
    %259 = arith.negf %258 : vector<16x32xf32>
    %260 = math.exp %259 : vector<16x32xf32>
    %cst_100 = arith.constant 1.000000e+00 : f32
    %261 = vector.broadcast %cst_100 : f32 to vector<16x32xf32>
    %262 = arith.addf %261, %260 : vector<16x32xf32>
    %263 = arith.divf %261, %262 : vector<16x32xf32>
    %264 = vector.extract_strided_slice %257 {offsets = [0, 0], sizes = [16, 32], strides = [1, 1]} : vector<16x64xf32> to vector<16x32xf32>
    %265 = arith.mulf %264, %263 : vector<16x32xf32>
    %cst_101 = arith.constant dense<0.000000e+00> : vector<16xf32>
    %266 = vector.multi_reduction <add>, %265, %cst_101 [1] : vector<16x32xf32> to vector<16xf32>
    %267 = vector.shape_cast %266 : vector<16xf32> to vector<16x1xf32>
    %268 = arith.mulf %265, %265 : vector<16x32xf32>
    %cst_102 = arith.constant dense<0.000000e+00> : vector<16xf32>
    %269 = vector.multi_reduction <add>, %268, %cst_102 [1] : vector<16x32xf32> to vector<16xf32>
    %270 = vector.shape_cast %269 : vector<16xf32> to vector<16x1xf32>
    %cst_103 = arith.constant 3.125000e-02 : f32
    %271 = vector.broadcast %cst_103 : f32 to vector<16x1xf32>
    %272 = arith.mulf %267, %271 : vector<16x1xf32>
    %cst_104 = arith.constant 3.125000e-02 : f32
    %273 = vector.broadcast %cst_104 : f32 to vector<16x1xf32>
    %274 = arith.mulf %270, %273 : vector<16x1xf32>
    %275 = arith.mulf %272, %272 : vector<16x1xf32>
    %276 = arith.subf %274, %275 : vector<16x1xf32>
    %cst_105 = arith.constant 0.000000e+00 : f32
    %277 = vector.broadcast %cst_105 : f32 to vector<16x1xf32>
    %278 = arith.maximumf %276, %277 : vector<16x1xf32>
    %279 = vector.broadcast %272 : vector<16x1xf32> to vector<16x32xf32>
    %280 = arith.subf %265, %279 : vector<16x32xf32>
    %cst_106 = arith.constant 9.99999974E-6 : f32
    %281 = vector.broadcast %cst_106 : f32 to vector<16x1xf32>
    %282 = arith.addf %278, %281 : vector<16x1xf32>
    %283 = math.rsqrt %282 : vector<16x1xf32>
    %284 = vector.broadcast %283 : vector<16x1xf32> to vector<16x32xf32>
    %285 = arith.mulf %280, %284 : vector<16x32xf32>
    %c2_107 = arith.constant 2 : index
    %c0_108 = arith.constant 0 : index
    %286 = vector.load %arg5[%c2_107, %c0_108] : memref<6x32xf32, #tpu.memory_space<vmem>>, vector<1x32xf32>
    %287 = vector.shape_cast %286 : vector<1x32xf32> to vector<32xf32>
    %288 = vector.shape_cast %287 : vector<32xf32> to vector<1x32xf32>
    %289 = vector.broadcast %288 : vector<1x32xf32> to vector<16x32xf32>
    %290 = arith.mulf %285, %289 : vector<16x32xf32>
    %c2_109 = arith.constant 2 : index
    %c0_110 = arith.constant 0 : index
    %291 = vector.load %arg6[%c2_109, %c0_110] : memref<6x32xf32, #tpu.memory_space<vmem>>, vector<1x32xf32>
    %292 = vector.shape_cast %291 : vector<1x32xf32> to vector<32xf32>
    %293 = vector.shape_cast %292 : vector<32xf32> to vector<1x32xf32>
    %294 = vector.broadcast %293 : vector<1x32xf32> to vector<16x32xf32>
    %295 = arith.addf %290, %294 : vector<16x32xf32>
    %c2_111 = arith.constant 2 : index
    %296 = memref.load %arg8[%c2_111] : memref<6xf32, #tpu.memory_space<smem>>
    %297 = vector.broadcast %296 : f32 to vector<16x32xf32>
    %298 = arith.mulf %297, %295 : vector<16x32xf32>
    %299 = arith.addf %232, %298 : vector<16x32xf32>
    %c8_i32_112 = arith.constant 8 : i32
    %300 = tpu.dynamic_rotate %299 by %c8_i32_112 dim 0 : vector<16x32xf32>, i32 -> vector<16x32xf32>
    %cst_113 = arith.constant 0.000000e+00 : f32
    %301 = vector.broadcast %cst_113 : f32 to vector<16x32xf32>
    %302 = arith.select %32, %300, %301 : vector<16x32xi1>, vector<16x32xf32>
    %303 = arith.truncf %302 : vector<16x32xf32> to vector<16x32xbf16>
    %c9 = arith.constant 9 : index
    %c0_114 = arith.constant 0 : index
    %c0_115 = arith.constant 0 : index
    %304 = vector.load %arg3[%c9, %c0_114, %c0_115] : memref<18x32x64xbf16, #tpu.memory_space<vmem>>, vector<1x32x64xbf16>
    %305 = vector.shape_cast %304 : vector<1x32x64xbf16> to vector<32x64xbf16>
    %cst_116 = arith.constant dense<0.000000e+00> : vector<16x64xf32>
    %306 = tpu.matmul %303, %305, %cst_116 {dimension_numbers = #tpu.dot_dimension_numbers<[1], [0], [0], [1], [0, 0, 1, 1], [], []>} : vector<16x32xbf16>, vector<32x64xbf16>, vector<16x64xf32> -> vector<16x64xf32>
    %307 = arith.truncf %299 : vector<16x32xf32> to vector<16x32xbf16>
    %c10 = arith.constant 10 : index
    %c0_117 = arith.constant 0 : index
    %c0_118 = arith.constant 0 : index
    %308 = vector.load %arg3[%c10, %c0_117, %c0_118] : memref<18x32x64xbf16, #tpu.memory_space<vmem>>, vector<1x32x64xbf16>
    %309 = vector.shape_cast %308 : vector<1x32x64xbf16> to vector<32x64xbf16>
    %cst_119 = arith.constant dense<0.000000e+00> : vector<16x64xf32>
    %310 = tpu.matmul %307, %309, %cst_119 {dimension_numbers = #tpu.dot_dimension_numbers<[1], [0], [0], [1], [0, 0, 1, 1], [], []>} : vector<16x32xbf16>, vector<32x64xbf16>, vector<16x64xf32> -> vector<16x64xf32>
    %311 = arith.addf %306, %310 : vector<16x64xf32>
    %c8_i32_120 = arith.constant 8 : i32
    %312 = tpu.dynamic_rotate %299 by %c8_i32_120 dim 0 : vector<16x32xf32>, i32 -> vector<16x32xf32>
    %cst_121 = arith.constant 0.000000e+00 : f32
    %313 = vector.broadcast %cst_121 : f32 to vector<16x32xf32>
    %314 = arith.select %95, %312, %313 : vector<16x32xi1>, vector<16x32xf32>
    %315 = arith.truncf %314 : vector<16x32xf32> to vector<16x32xbf16>
    %c11 = arith.constant 11 : index
    %c0_122 = arith.constant 0 : index
    %c0_123 = arith.constant 0 : index
    %316 = vector.load %arg3[%c11, %c0_122, %c0_123] : memref<18x32x64xbf16, #tpu.memory_space<vmem>>, vector<1x32x64xbf16>
    %317 = vector.shape_cast %316 : vector<1x32x64xbf16> to vector<32x64xbf16>
    %cst_124 = arith.constant dense<0.000000e+00> : vector<16x64xf32>
    %318 = tpu.matmul %315, %317, %cst_124 {dimension_numbers = #tpu.dot_dimension_numbers<[1], [0], [0], [1], [0, 0, 1, 1], [], []>} : vector<16x32xbf16>, vector<32x64xbf16>, vector<16x64xf32> -> vector<16x64xf32>
    %319 = arith.addf %311, %318 : vector<16x64xf32>
    %c3_125 = arith.constant 3 : index
    %c0_126 = arith.constant 0 : index
    %320 = vector.load %arg4[%c3_125, %c0_126] : memref<6x64xf32, #tpu.memory_space<vmem>>, vector<1x64xf32>
    %321 = vector.shape_cast %320 : vector<1x64xf32> to vector<64xf32>
    %322 = vector.shape_cast %321 : vector<64xf32> to vector<1x64xf32>
    %323 = vector.broadcast %322 : vector<1x64xf32> to vector<16x64xf32>
    %324 = arith.addf %319, %323 : vector<16x64xf32>
    %325 = vector.extract_strided_slice %324 {offsets = [0, 32], sizes = [16, 32], strides = [1, 1]} : vector<16x64xf32> to vector<16x32xf32>
    %326 = arith.negf %325 : vector<16x32xf32>
    %327 = math.exp %326 : vector<16x32xf32>
    %cst_127 = arith.constant 1.000000e+00 : f32
    %328 = vector.broadcast %cst_127 : f32 to vector<16x32xf32>
    %329 = arith.addf %328, %327 : vector<16x32xf32>
    %330 = arith.divf %328, %329 : vector<16x32xf32>
    %331 = vector.extract_strided_slice %324 {offsets = [0, 0], sizes = [16, 32], strides = [1, 1]} : vector<16x64xf32> to vector<16x32xf32>
    %332 = arith.mulf %331, %330 : vector<16x32xf32>
    %cst_128 = arith.constant dense<0.000000e+00> : vector<16xf32>
    %333 = vector.multi_reduction <add>, %332, %cst_128 [1] : vector<16x32xf32> to vector<16xf32>
    %334 = vector.shape_cast %333 : vector<16xf32> to vector<16x1xf32>
    %335 = arith.mulf %332, %332 : vector<16x32xf32>
    %cst_129 = arith.constant dense<0.000000e+00> : vector<16xf32>
    %336 = vector.multi_reduction <add>, %335, %cst_129 [1] : vector<16x32xf32> to vector<16xf32>
    %337 = vector.shape_cast %336 : vector<16xf32> to vector<16x1xf32>
    %cst_130 = arith.constant 3.125000e-02 : f32
    %338 = vector.broadcast %cst_130 : f32 to vector<16x1xf32>
    %339 = arith.mulf %334, %338 : vector<16x1xf32>
    %cst_131 = arith.constant 3.125000e-02 : f32
    %340 = vector.broadcast %cst_131 : f32 to vector<16x1xf32>
    %341 = arith.mulf %337, %340 : vector<16x1xf32>
    %342 = arith.mulf %339, %339 : vector<16x1xf32>
    %343 = arith.subf %341, %342 : vector<16x1xf32>
    %cst_132 = arith.constant 0.000000e+00 : f32
    %344 = vector.broadcast %cst_132 : f32 to vector<16x1xf32>
    %345 = arith.maximumf %343, %344 : vector<16x1xf32>
    %346 = vector.broadcast %339 : vector<16x1xf32> to vector<16x32xf32>
    %347 = arith.subf %332, %346 : vector<16x32xf32>
    %cst_133 = arith.constant 9.99999974E-6 : f32
    %348 = vector.broadcast %cst_133 : f32 to vector<16x1xf32>
    %349 = arith.addf %345, %348 : vector<16x1xf32>
    %350 = math.rsqrt %349 : vector<16x1xf32>
    %351 = vector.broadcast %350 : vector<16x1xf32> to vector<16x32xf32>
    %352 = arith.mulf %347, %351 : vector<16x32xf32>
    %c3_134 = arith.constant 3 : index
    %c0_135 = arith.constant 0 : index
    %353 = vector.load %arg5[%c3_134, %c0_135] : memref<6x32xf32, #tpu.memory_space<vmem>>, vector<1x32xf32>
    %354 = vector.shape_cast %353 : vector<1x32xf32> to vector<32xf32>
    %355 = vector.shape_cast %354 : vector<32xf32> to vector<1x32xf32>
    %356 = vector.broadcast %355 : vector<1x32xf32> to vector<16x32xf32>
    %357 = arith.mulf %352, %356 : vector<16x32xf32>
    %c3_136 = arith.constant 3 : index
    %c0_137 = arith.constant 0 : index
    %358 = vector.load %arg6[%c3_136, %c0_137] : memref<6x32xf32, #tpu.memory_space<vmem>>, vector<1x32xf32>
    %359 = vector.shape_cast %358 : vector<1x32xf32> to vector<32xf32>
    %360 = vector.shape_cast %359 : vector<32xf32> to vector<1x32xf32>
    %361 = vector.broadcast %360 : vector<1x32xf32> to vector<16x32xf32>
    %362 = arith.addf %357, %361 : vector<16x32xf32>
    %c3_138 = arith.constant 3 : index
    %363 = memref.load %arg8[%c3_138] : memref<6xf32, #tpu.memory_space<smem>>
    %364 = vector.broadcast %363 : f32 to vector<16x32xf32>
    %365 = arith.mulf %364, %362 : vector<16x32xf32>
    %366 = arith.addf %299, %365 : vector<16x32xf32>
    %c1_i32_139 = arith.constant 1 : i32
    %367 = tpu.dynamic_rotate %366 by %c1_i32_139 dim 0 : vector<16x32xf32>, i32 -> vector<16x32xf32>
    %cst_140 = arith.constant 0.000000e+00 : f32
    %368 = vector.broadcast %cst_140 : f32 to vector<16x32xf32>
    %369 = arith.select %59, %367, %368 : vector<16x32xi1>, vector<16x32xf32>
    %370 = arith.truncf %369 : vector<16x32xf32> to vector<16x32xbf16>
    %c12 = arith.constant 12 : index
    %c0_141 = arith.constant 0 : index
    %c0_142 = arith.constant 0 : index
    %371 = vector.load %arg3[%c12, %c0_141, %c0_142] : memref<18x32x64xbf16, #tpu.memory_space<vmem>>, vector<1x32x64xbf16>
    %372 = vector.shape_cast %371 : vector<1x32x64xbf16> to vector<32x64xbf16>
    %cst_143 = arith.constant dense<0.000000e+00> : vector<16x64xf32>
    %373 = tpu.matmul %370, %372, %cst_143 {dimension_numbers = #tpu.dot_dimension_numbers<[1], [0], [0], [1], [0, 0, 1, 1], [], []>} : vector<16x32xbf16>, vector<32x64xbf16>, vector<16x64xf32> -> vector<16x64xf32>
    %374 = arith.truncf %366 : vector<16x32xf32> to vector<16x32xbf16>
    %c13 = arith.constant 13 : index
    %c0_144 = arith.constant 0 : index
    %c0_145 = arith.constant 0 : index
    %375 = vector.load %arg3[%c13, %c0_144, %c0_145] : memref<18x32x64xbf16, #tpu.memory_space<vmem>>, vector<1x32x64xbf16>
    %376 = vector.shape_cast %375 : vector<1x32x64xbf16> to vector<32x64xbf16>
    %cst_146 = arith.constant dense<0.000000e+00> : vector<16x64xf32>
    %377 = tpu.matmul %374, %376, %cst_146 {dimension_numbers = #tpu.dot_dimension_numbers<[1], [0], [0], [1], [0, 0, 1, 1], [], []>} : vector<16x32xbf16>, vector<32x64xbf16>, vector<16x64xf32> -> vector<16x64xf32>
    %378 = arith.addf %373, %377 : vector<16x64xf32>
    %c15_i32_147 = arith.constant 15 : i32
    %379 = tpu.dynamic_rotate %366 by %c15_i32_147 dim 0 : vector<16x32xf32>, i32 -> vector<16x32xf32>
    %cst_148 = arith.constant 0.000000e+00 : f32
    %380 = vector.broadcast %cst_148 : f32 to vector<16x32xf32>
    %381 = arith.select %68, %379, %380 : vector<16x32xi1>, vector<16x32xf32>
    %382 = arith.truncf %381 : vector<16x32xf32> to vector<16x32xbf16>
    %c14 = arith.constant 14 : index
    %c0_149 = arith.constant 0 : index
    %c0_150 = arith.constant 0 : index
    %383 = vector.load %arg3[%c14, %c0_149, %c0_150] : memref<18x32x64xbf16, #tpu.memory_space<vmem>>, vector<1x32x64xbf16>
    %384 = vector.shape_cast %383 : vector<1x32x64xbf16> to vector<32x64xbf16>
    %cst_151 = arith.constant dense<0.000000e+00> : vector<16x64xf32>
    %385 = tpu.matmul %382, %384, %cst_151 {dimension_numbers = #tpu.dot_dimension_numbers<[1], [0], [0], [1], [0, 0, 1, 1], [], []>} : vector<16x32xbf16>, vector<32x64xbf16>, vector<16x64xf32> -> vector<16x64xf32>
    %386 = arith.addf %378, %385 : vector<16x64xf32>
    %c4_152 = arith.constant 4 : index
    %c0_153 = arith.constant 0 : index
    %387 = vector.load %arg4[%c4_152, %c0_153] : memref<6x64xf32, #tpu.memory_space<vmem>>, vector<1x64xf32>
    %388 = vector.shape_cast %387 : vector<1x64xf32> to vector<64xf32>
    %389 = vector.shape_cast %388 : vector<64xf32> to vector<1x64xf32>
    %390 = vector.broadcast %389 : vector<1x64xf32> to vector<16x64xf32>
    %391 = arith.addf %386, %390 : vector<16x64xf32>
    %392 = vector.extract_strided_slice %391 {offsets = [0, 32], sizes = [16, 32], strides = [1, 1]} : vector<16x64xf32> to vector<16x32xf32>
    %393 = arith.negf %392 : vector<16x32xf32>
    %394 = math.exp %393 : vector<16x32xf32>
    %cst_154 = arith.constant 1.000000e+00 : f32
    %395 = vector.broadcast %cst_154 : f32 to vector<16x32xf32>
    %396 = arith.addf %395, %394 : vector<16x32xf32>
    %397 = arith.divf %395, %396 : vector<16x32xf32>
    %398 = vector.extract_strided_slice %391 {offsets = [0, 0], sizes = [16, 32], strides = [1, 1]} : vector<16x64xf32> to vector<16x32xf32>
    %399 = arith.mulf %398, %397 : vector<16x32xf32>
    %cst_155 = arith.constant dense<0.000000e+00> : vector<16xf32>
    %400 = vector.multi_reduction <add>, %399, %cst_155 [1] : vector<16x32xf32> to vector<16xf32>
    %401 = vector.shape_cast %400 : vector<16xf32> to vector<16x1xf32>
    %402 = arith.mulf %399, %399 : vector<16x32xf32>
    %cst_156 = arith.constant dense<0.000000e+00> : vector<16xf32>
    %403 = vector.multi_reduction <add>, %402, %cst_156 [1] : vector<16x32xf32> to vector<16xf32>
    %404 = vector.shape_cast %403 : vector<16xf32> to vector<16x1xf32>
    %cst_157 = arith.constant 3.125000e-02 : f32
    %405 = vector.broadcast %cst_157 : f32 to vector<16x1xf32>
    %406 = arith.mulf %401, %405 : vector<16x1xf32>
    %cst_158 = arith.constant 3.125000e-02 : f32
    %407 = vector.broadcast %cst_158 : f32 to vector<16x1xf32>
    %408 = arith.mulf %404, %407 : vector<16x1xf32>
    %409 = arith.mulf %406, %406 : vector<16x1xf32>
    %410 = arith.subf %408, %409 : vector<16x1xf32>
    %cst_159 = arith.constant 0.000000e+00 : f32
    %411 = vector.broadcast %cst_159 : f32 to vector<16x1xf32>
    %412 = arith.maximumf %410, %411 : vector<16x1xf32>
    %413 = vector.broadcast %406 : vector<16x1xf32> to vector<16x32xf32>
    %414 = arith.subf %399, %413 : vector<16x32xf32>
    %cst_160 = arith.constant 9.99999974E-6 : f32
    %415 = vector.broadcast %cst_160 : f32 to vector<16x1xf32>
    %416 = arith.addf %412, %415 : vector<16x1xf32>
    %417 = math.rsqrt %416 : vector<16x1xf32>
    %418 = vector.broadcast %417 : vector<16x1xf32> to vector<16x32xf32>
    %419 = arith.mulf %414, %418 : vector<16x32xf32>
    %c4_161 = arith.constant 4 : index
    %c0_162 = arith.constant 0 : index
    %420 = vector.load %arg5[%c4_161, %c0_162] : memref<6x32xf32, #tpu.memory_space<vmem>>, vector<1x32xf32>
    %421 = vector.shape_cast %420 : vector<1x32xf32> to vector<32xf32>
    %422 = vector.shape_cast %421 : vector<32xf32> to vector<1x32xf32>
    %423 = vector.broadcast %422 : vector<1x32xf32> to vector<16x32xf32>
    %424 = arith.mulf %419, %423 : vector<16x32xf32>
    %c4_163 = arith.constant 4 : index
    %c0_164 = arith.constant 0 : index
    %425 = vector.load %arg6[%c4_163, %c0_164] : memref<6x32xf32, #tpu.memory_space<vmem>>, vector<1x32xf32>
    %426 = vector.shape_cast %425 : vector<1x32xf32> to vector<32xf32>
    %427 = vector.shape_cast %426 : vector<32xf32> to vector<1x32xf32>
    %428 = vector.broadcast %427 : vector<1x32xf32> to vector<16x32xf32>
    %429 = arith.addf %424, %428 : vector<16x32xf32>
    %c4_165 = arith.constant 4 : index
    %430 = memref.load %arg8[%c4_165] : memref<6xf32, #tpu.memory_space<smem>>
    %431 = vector.broadcast %430 : f32 to vector<16x32xf32>
    %432 = arith.mulf %431, %429 : vector<16x32xf32>
    %433 = arith.addf %366, %432 : vector<16x32xf32>
    %c1_i32_166 = arith.constant 1 : i32
    %434 = tpu.dynamic_rotate %433 by %c1_i32_166 dim 0 : vector<16x32xf32>, i32 -> vector<16x32xf32>
    %cst_167 = arith.constant 0.000000e+00 : f32
    %435 = vector.broadcast %cst_167 : f32 to vector<16x32xf32>
    %436 = arith.select %59, %434, %435 : vector<16x32xi1>, vector<16x32xf32>
    %437 = arith.truncf %436 : vector<16x32xf32> to vector<16x32xbf16>
    %c15 = arith.constant 15 : index
    %c0_168 = arith.constant 0 : index
    %c0_169 = arith.constant 0 : index
    %438 = vector.load %arg3[%c15, %c0_168, %c0_169] : memref<18x32x64xbf16, #tpu.memory_space<vmem>>, vector<1x32x64xbf16>
    %439 = vector.shape_cast %438 : vector<1x32x64xbf16> to vector<32x64xbf16>
    %cst_170 = arith.constant dense<0.000000e+00> : vector<16x64xf32>
    %440 = tpu.matmul %437, %439, %cst_170 {dimension_numbers = #tpu.dot_dimension_numbers<[1], [0], [0], [1], [0, 0, 1, 1], [], []>} : vector<16x32xbf16>, vector<32x64xbf16>, vector<16x64xf32> -> vector<16x64xf32>
    %441 = arith.truncf %433 : vector<16x32xf32> to vector<16x32xbf16>
    %c16 = arith.constant 16 : index
    %c0_171 = arith.constant 0 : index
    %c0_172 = arith.constant 0 : index
    %442 = vector.load %arg3[%c16, %c0_171, %c0_172] : memref<18x32x64xbf16, #tpu.memory_space<vmem>>, vector<1x32x64xbf16>
    %443 = vector.shape_cast %442 : vector<1x32x64xbf16> to vector<32x64xbf16>
    %cst_173 = arith.constant dense<0.000000e+00> : vector<16x64xf32>
    %444 = tpu.matmul %441, %443, %cst_173 {dimension_numbers = #tpu.dot_dimension_numbers<[1], [0], [0], [1], [0, 0, 1, 1], [], []>} : vector<16x32xbf16>, vector<32x64xbf16>, vector<16x64xf32> -> vector<16x64xf32>
    %445 = arith.addf %440, %444 : vector<16x64xf32>
    %c15_i32_174 = arith.constant 15 : i32
    %446 = tpu.dynamic_rotate %433 by %c15_i32_174 dim 0 : vector<16x32xf32>, i32 -> vector<16x32xf32>
    %cst_175 = arith.constant 0.000000e+00 : f32
    %447 = vector.broadcast %cst_175 : f32 to vector<16x32xf32>
    %448 = arith.select %68, %446, %447 : vector<16x32xi1>, vector<16x32xf32>
    %449 = arith.truncf %448 : vector<16x32xf32> to vector<16x32xbf16>
    %c17 = arith.constant 17 : index
    %c0_176 = arith.constant 0 : index
    %c0_177 = arith.constant 0 : index
    %450 = vector.load %arg3[%c17, %c0_176, %c0_177] : memref<18x32x64xbf16, #tpu.memory_space<vmem>>, vector<1x32x64xbf16>
    %451 = vector.shape_cast %450 : vector<1x32x64xbf16> to vector<32x64xbf16>
    %cst_178 = arith.constant dense<0.000000e+00> : vector<16x64xf32>
    %452 = tpu.matmul %449, %451, %cst_178 {dimension_numbers = #tpu.dot_dimension_numbers<[1], [0], [0], [1], [0, 0, 1, 1], [], []>} : vector<16x32xbf16>, vector<32x64xbf16>, vector<16x64xf32> -> vector<16x64xf32>
    %453 = arith.addf %445, %452 : vector<16x64xf32>
    %c5_179 = arith.constant 5 : index
    %c0_180 = arith.constant 0 : index
    %454 = vector.load %arg4[%c5_179, %c0_180] : memref<6x64xf32, #tpu.memory_space<vmem>>, vector<1x64xf32>
    %455 = vector.shape_cast %454 : vector<1x64xf32> to vector<64xf32>
    %456 = vector.shape_cast %455 : vector<64xf32> to vector<1x64xf32>
    %457 = vector.broadcast %456 : vector<1x64xf32> to vector<16x64xf32>
    %458 = arith.addf %453, %457 : vector<16x64xf32>
    %459 = vector.extract_strided_slice %458 {offsets = [0, 32], sizes = [16, 32], strides = [1, 1]} : vector<16x64xf32> to vector<16x32xf32>
    %460 = arith.negf %459 : vector<16x32xf32>
    %461 = math.exp %460 : vector<16x32xf32>
    %cst_181 = arith.constant 1.000000e+00 : f32
    %462 = vector.broadcast %cst_181 : f32 to vector<16x32xf32>
    %463 = arith.addf %462, %461 : vector<16x32xf32>
    %464 = arith.divf %462, %463 : vector<16x32xf32>
    %465 = vector.extract_strided_slice %458 {offsets = [0, 0], sizes = [16, 32], strides = [1, 1]} : vector<16x64xf32> to vector<16x32xf32>
    %466 = arith.mulf %465, %464 : vector<16x32xf32>
    %cst_182 = arith.constant dense<0.000000e+00> : vector<16xf32>
    %467 = vector.multi_reduction <add>, %466, %cst_182 [1] : vector<16x32xf32> to vector<16xf32>
    %468 = vector.shape_cast %467 : vector<16xf32> to vector<16x1xf32>
    %469 = arith.mulf %466, %466 : vector<16x32xf32>
    %cst_183 = arith.constant dense<0.000000e+00> : vector<16xf32>
    %470 = vector.multi_reduction <add>, %469, %cst_183 [1] : vector<16x32xf32> to vector<16xf32>
    %471 = vector.shape_cast %470 : vector<16xf32> to vector<16x1xf32>
    %cst_184 = arith.constant 3.125000e-02 : f32
    %472 = vector.broadcast %cst_184 : f32 to vector<16x1xf32>
    %473 = arith.mulf %468, %472 : vector<16x1xf32>
    %cst_185 = arith.constant 3.125000e-02 : f32
    %474 = vector.broadcast %cst_185 : f32 to vector<16x1xf32>
    %475 = arith.mulf %471, %474 : vector<16x1xf32>
    %476 = arith.mulf %473, %473 : vector<16x1xf32>
    %477 = arith.subf %475, %476 : vector<16x1xf32>
    %cst_186 = arith.constant 0.000000e+00 : f32
    %478 = vector.broadcast %cst_186 : f32 to vector<16x1xf32>
    %479 = arith.maximumf %477, %478 : vector<16x1xf32>
    %480 = vector.broadcast %473 : vector<16x1xf32> to vector<16x32xf32>
    %481 = arith.subf %466, %480 : vector<16x32xf32>
    %cst_187 = arith.constant 9.99999974E-6 : f32
    %482 = vector.broadcast %cst_187 : f32 to vector<16x1xf32>
    %483 = arith.addf %479, %482 : vector<16x1xf32>
    %484 = math.rsqrt %483 : vector<16x1xf32>
    %485 = vector.broadcast %484 : vector<16x1xf32> to vector<16x32xf32>
    %486 = arith.mulf %481, %485 : vector<16x32xf32>
    %c5_188 = arith.constant 5 : index
    %c0_189 = arith.constant 0 : index
    %487 = vector.load %arg5[%c5_188, %c0_189] : memref<6x32xf32, #tpu.memory_space<vmem>>, vector<1x32xf32>
    %488 = vector.shape_cast %487 : vector<1x32xf32> to vector<32xf32>
    %489 = vector.shape_cast %488 : vector<32xf32> to vector<1x32xf32>
    %490 = vector.broadcast %489 : vector<1x32xf32> to vector<16x32xf32>
    %491 = arith.mulf %486, %490 : vector<16x32xf32>
    %c5_190 = arith.constant 5 : index
    %c0_191 = arith.constant 0 : index
    %492 = vector.load %arg6[%c5_190, %c0_191] : memref<6x32xf32, #tpu.memory_space<vmem>>, vector<1x32xf32>
    %493 = vector.shape_cast %492 : vector<1x32xf32> to vector<32xf32>
    %494 = vector.shape_cast %493 : vector<32xf32> to vector<1x32xf32>
    %495 = vector.broadcast %494 : vector<1x32xf32> to vector<16x32xf32>
    %496 = arith.addf %491, %495 : vector<16x32xf32>
    %c5_192 = arith.constant 5 : index
    %497 = memref.load %arg8[%c5_192] : memref<6xf32, #tpu.memory_space<smem>>
    %498 = vector.broadcast %497 : f32 to vector<16x32xf32>
    %499 = arith.mulf %498, %496 : vector<16x32xf32>
    %500 = arith.addf %433, %499 : vector<16x32xf32>
    %c0_193 = arith.constant 0 : index
    %c0_194 = arith.constant 0 : index
    %501 = vector.load %arg7[%c0_193, %c0_194] : memref<1x32xf32, #tpu.memory_space<vmem>>, vector<1x32xf32>
    %502 = vector.shape_cast %501 : vector<1x32xf32> to vector<32xf32>
    %503 = vector.shape_cast %502 : vector<32xf32> to vector<1x32xf32>
    %504 = vector.broadcast %503 : vector<1x32xf32> to vector<16x32xf32>
    %505 = arith.mulf %500, %504 : vector<16x32xf32>
    %cst_195 = arith.constant dense<0.000000e+00> : vector<16xf32>
    %506 = vector.multi_reduction <add>, %505, %cst_195 [1] : vector<16x32xf32> to vector<16xf32>
    %507 = vector.shape_cast %506 : vector<16xf32> to vector<16x1xf32>
    %c0_196 = arith.constant 0 : index
    %508 = memref.load %arg9[%c0_196] : memref<1xf32, #tpu.memory_space<smem>>
    %509 = vector.broadcast %508 : f32 to vector<16x1xf32>
    %510 = arith.addf %507, %509 : vector<16x1xf32>
    %511 = arith.negf %510 : vector<16x1xf32>
    %512 = math.exp %511 : vector<16x1xf32>
    %cst_197 = arith.constant 1.000000e+00 : f32
    %513 = vector.broadcast %cst_197 : f32 to vector<16x1xf32>
    %514 = arith.addf %513, %512 : vector<16x1xf32>
    %515 = arith.divf %513, %514 : vector<16x1xf32>
    %516 = tpu.iota {dimensions = array<i32: 1>} : vector<16x128xi32>
    %c0_i32_198 = arith.constant 0 : i32
    %517 = vector.broadcast %c0_i32_198 : i32 to vector<16x128xi32>
    %518 = arith.cmpi eq, %516, %517 : vector<16x128xi32>
    %c1_i32_199 = arith.constant 1 : i32
    %519 = vector.broadcast %c1_i32_199 : i32 to vector<16x128xi32>
    %520 = arith.cmpi eq, %516, %519 : vector<16x128xi32>
    %cst_200 = arith.constant 0.000000e+00 : f32
    %521 = vector.shape_cast %6 : vector<16x1xf32> to vector<16x1xf32>
    %522 = vector.broadcast %521 : vector<16x1xf32> to vector<16x128xf32>
    %523 = vector.broadcast %cst_200 : f32 to vector<16x128xf32>
    %524 = arith.select %520, %522, %523 : vector<16x128xi1>, vector<16x128xf32>
    %525 = vector.shape_cast %515 : vector<16x1xf32> to vector<16x1xf32>
    %526 = vector.broadcast %525 : vector<16x1xf32> to vector<16x128xf32>
    %527 = arith.select %518, %526, %524 : vector<16x128xi1>, vector<16x128xf32>
    %c0_201 = arith.constant 0 : index
    %c0_202 = arith.constant 0 : index
    %528 = vector.load %arg10[%c0_201, %c0_202] : memref<16x128xf32, #tpu.memory_space<vmem>>, vector<16x128xf32>
    tpu.vector_store %arg10[%c0_201, %c0_202], %527 {strides = array<i32>} : memref<16x128xf32, #tpu.memory_space<vmem>>, vector<16x128xf32>,
    return
  }
  func.func @transform_0(%arg0: i32) -> (i32, i32) {
    %c0_i32 = arith.constant 0 : i32
    %c0_i32_0 = arith.constant 0 : i32
    return %arg0, %c0_i32 : i32, i32
  }
  func.func @transform_1(%arg0: i32) -> (i32, i32) {
    %c0_i32 = arith.constant 0 : i32
    %c0_i32_0 = arith.constant 0 : i32
    %c0_i32_1 = arith.constant 0 : i32
    return %c0_i32, %c0_i32_0 : i32, i32
  }
  func.func @transform_2(%arg0: i32) -> (i32, i32, i32) {
    %c0_i32 = arith.constant 0 : i32
    %c0_i32_0 = arith.constant 0 : i32
    %c0_i32_1 = arith.constant 0 : i32
    %c0_i32_2 = arith.constant 0 : i32
    return %c0_i32, %c0_i32_0, %c0_i32_1 : i32, i32, i32
  }
  func.func @transform_3(%arg0: i32) -> (i32, i32) {
    %c0_i32 = arith.constant 0 : i32
    %c0_i32_0 = arith.constant 0 : i32
    %c0_i32_1 = arith.constant 0 : i32
    return %c0_i32, %c0_i32_0 : i32, i32
  }
  func.func @transform_4(%arg0: i32) -> (i32, i32) {
    %c0_i32 = arith.constant 0 : i32
    %c0_i32_0 = arith.constant 0 : i32
    %c0_i32_1 = arith.constant 0 : i32
    return %c0_i32, %c0_i32_0 : i32, i32
  }
  func.func @transform_5(%arg0: i32) -> (i32, i32) {
    %c0_i32 = arith.constant 0 : i32
    %c0_i32_0 = arith.constant 0 : i32
    %c0_i32_1 = arith.constant 0 : i32
    return %c0_i32, %c0_i32_0 : i32, i32
  }
  func.func @transform_6(%arg0: i32) -> (i32, i32) {
    %c0_i32 = arith.constant 0 : i32
    %c0_i32_0 = arith.constant 0 : i32
    %c0_i32_1 = arith.constant 0 : i32
    return %c0_i32, %c0_i32_0 : i32, i32
  }
  func.func @transform_7(%arg0: i32) -> i32 {
    %c0_i32 = arith.constant 0 : i32
    %c0_i32_0 = arith.constant 0 : i32
    return %c0_i32 : i32
  }
  func.func @transform_8(%arg0: i32) -> i32 {
    %c0_i32 = arith.constant 0 : i32
    %c0_i32_0 = arith.constant 0 : i32
    return %c0_i32 : i32
  }
  func.func @transform_9(%arg0: i32) -> (i32, i32) {
    %c0_i32 = arith.constant 0 : i32
    %c0_i32_0 = arith.constant 0 : i32
    return %arg0, %c0_i32 : i32, i32
  }
}

</mosaic_0001>

<llo_original>
// kernel: tpu_custom_call.1
$region0: #{tpu_custom_call.1}
  #allocation0 [shape = 'u32[]', space=smem, size = 0x4, offset = 0x4, fixed_abs, tag = 'smem constant byte address 0x4 - core index']
  #allocation1 [shape = 'u32[72,128]{1,0:T(1,128)}', space=vmem, size = 0x9000, scoped, tag = 'internal scratch']
  #allocation2 [shape = 'f32[1]{0:T(128)S(6)}', space=smem, size = 0x200, scoped, tag = 'scoped memory for tpu_custom_call.1']
  %s0 = inlined_call_operand.vmem [shape: f32[32,64], index: 0, kind: input, shape index: {}]
  %s1 = inlined_call_operand.vmem [shape: bf16[64,32], index: 1, kind: input, shape index: {}]
  %s2 = inlined_call_operand.hbm [shape: bf16[18,32,64], index: 2, kind: input, shape index: {}]
  %s3 = inlined_call_operand.vmem [shape: f32[6,64], index: 3, kind: input, shape index: {}]
  %s4 = inlined_call_operand.vmem [shape: f32[6,32], index: 4, kind: input, shape index: {}]
  %s5 = inlined_call_operand.hbm [shape: f32[6,32], index: 5, kind: input, shape index: {}]
  %s6 = inlined_call_operand.vmem [shape: f32[1,32], index: 6, kind: input, shape index: {}]
  %s7 = inlined_call_operand.vmem [shape: f32[6], index: 7, kind: input, shape index: {}]
  %s8 = inlined_call_operand.<no memory space> [shape: f32[1], index: 8, kind: input, shape index: {}]
  %s9 = inlined_call_operand.hbm [shape: f32[32,128], index: 9, kind: output, shape index: {}]
  %s10 = sld [smem:[#allocation0]]
  $region81: #{tpu_custom_call.1} parent=0
    _
  %s12 = ssub.s32 1, %s10
  %s13 = scalar_select 0, %s12, %s10
  %14 = sst [smem:[#allocation2]] %s8
  $region1: #{tpu_custom_call.1} parent=0
    #allocation3 [shape = 'u8[147456]{0}', space=vmem, size = 0x24000, scoped, tag = 'input window, operand 2, single buffered']
    #allocation4 [shape = 's32[2]{0}', space=sflag, size = 0x8, scoped, tag = 'scoped memory for tpu_custom_call.1']
    #allocation5 [shape = 's32[2]{0}', space=sflag, size = 0x8, scoped, tag = 'scoped memory for tpu_custom_call.1']
    #allocation6 [shape = 's32[2]{0}', space=sflag, size = 0x8, scoped, tag = 'scoped memory for tpu_custom_call.1']
    #allocation7 [shape = 'u8[4096]{0}', space=vmem, size = 0x1000, scoped, tag = 'input window, operand 5, single buffered']
    #allocation8 [shape = 's32[1]{0}', space=sflag, size = 0x4, scoped, tag = 'scoped memory for tpu_custom_call.1']
    #allocation9 [shape = 'u8[512]{0}', space=smem, size = 0x200, scoped, tag = 'input window, operand 7, single buffered']
    #allocation10 [shape = 'u8[16384]{0}', space=vmem, size = 0x4000, scoped, tag = 'output window, operand 0']
    %15 = vsyncpa [#allocation4], 0
    %16 = vsyncpa [#allocation8], 0
    %17 = vsyncpa [#allocation6], 0
    %18 = vsyncpa [#allocation5], 0
    %s19 = scalar_lea.sflag [#allocation5], 1
    %20 = vsyncpa %s19, 0
    loop: start=0, step=1, limit=4
    $region2: #{tpu_custom_call.1} parent=1 // loop_pre_header
      _
    $region3: #{tpu_custom_call.1} parent=1 // loop_header
      %s22 = sphi 0, %s26
      %p23 = scmp.ge.s32.totalorder %s22, 4
      %s32 = sphi 0, %s34
      %s35 = sphi 0, %s32
      %s36 = sphi 0, %s35
      %s52 = sphi 0, %s36
      %s56 = sphi 0, %s56
      %s58 = sphi 0, %s56
      %s59 = sphi 0, %s58
      %s73 = sphi 0, %s59
      %s77 = sphi 0, %s77
      %s79 = sphi 0, %s77
      %s80 = sphi 0, %s79
      %s94 = sphi 0, %s80
      %s98 = sphi 0, %s98
      %s100 = sphi 0, %s98
      %s101 = sphi 0, %s100
      %s115 = sphi 0, %s101
      %s119 = sphi 0, %s119
      %s121 = sphi 0, %s119
      %s122 = sphi 0, %s121
      %s136 = sphi 0, %s122
      %s140 = sphi 0, %s140
      %s142 = sphi 0, %s140
      %s143 = sphi 0, %s142
      %s157 = sphi 0, %s143
      %s161 = sphi 0, %s161
      %s163 = sphi 0, %s161
      %s164 = sphi 0, %s163
      %s178 = sphi 0, %s164
      %s182 = sphi 0, %s182
      %s184 = sphi 0, %s182
      %s185 = sphi 0, %s184
      %s199 = sphi 0, %s185
      %s203 = sphi 0, %s203
      %s205 = sphi 0, %s203
      %s206 = sphi 0, %s205
      %s220 = sphi 0, %s206
      %s226 = sphi 0, %s228
      %s229 = sphi 0, %s226
      %s230 = sphi 0, %s229
      %s246 = sphi 0, %s230
    $region4: #{tpu_custom_call.1} parent=1 // loop_header_branch
      %25 = sbr.rel (%p23) target = $region8
    $region5: #{tpu_custom_call.1} parent=1 // loop_body
      %s27 = ssub.s32 %s22, 1
      %s28 = ssub.s32 %s22, 2
      %s29 = sadd.s32 %s22, 1
      %s30 = ssub.s32 %s22, %s29
      %p31 = scmp.eq.s32.totalorder %s30, 0
      %s33 = sadd.s32 %s32, 1
      %s34 = scalar_select %p31, %s32, %s33
      %p37 = pneg %p31
      %p38 = scmp.eq.s32.totalorder %s22, 1
      %p39 = por %p37, %p38
      %p40 = scmp.ne.s32.totalorder %s32, %s35
      %p41 = scmp.eq.s32.totalorder %s22, 0
      %p42 = por %p40, %p41
      %p43 = scmp.ne.s32.totalorder %s32, %s35
      %p44 = scmp.eq.s32.totalorder %s27, 1
      %p45 = por %p43, %p44
      %p46 = scmp.ne.s32.totalorder %s35, %s36
      %p47 = scmp.eq.s32.totalorder %s27, 0
      %p48 = por %p46, %p47
      %p49 = scmp.ne.s32.totalorder %s35, %s36
      %p50 = scmp.eq.s32.totalorder %s28, 1
      %p51 = por %p49, %p50
      %p53 = scmp.ne.s32.totalorder %s36, %s52
      %p54 = scmp.eq.s32.totalorder %s28, 0
      %p55 = por %p53, %p54
      %s57 = sadd.s32 %s56, 1
      %p60 = scmp.eq.s32.totalorder %s22, 1
      %p61 = scmp.ne.s32.totalorder %s56, %s58
      %p62 = scmp.eq.s32.totalorder %s22, 0
      %p63 = por %p61, %p62
      %p64 = scmp.ne.s32.totalorder %s56, %s58
      %p65 = scmp.eq.s32.totalorder %s27, 1
      %p66 = por %p64, %p65
      %p67 = scmp.ne.s32.totalorder %s58, %s59
      %p68 = scmp.eq.s32.totalorder %s27, 0
      %p69 = por %p67, %p68
      %p70 = scmp.ne.s32.totalorder %s58, %s59
      %p71 = scmp.eq.s32.totalorder %s28, 1
      %p72 = por %p70, %p71
      %p74 = scmp.ne.s32.totalorder %s59, %s73
      %p75 = scmp.eq.s32.totalorder %s28, 0
      %p76 = por %p74, %p75
      %s78 = sadd.s32 %s77, 1
      %p81 = scmp.eq.s32.totalorder %s22, 1
      %p82 = scmp.ne.s32.totalorder %s77, %s79
      %p83 = scmp.eq.s32.totalorder %s22, 0
      %p84 = por %p82, %p83
      %p85 = scmp.ne.s32.totalorder %s77, %s79
      %p86 = scmp.eq.s32.totalorder %s27, 1
      %p87 = por %p85, %p86
      %p88 = scmp.ne.s32.totalorder %s79, %s80
      %p89 = scmp.eq.s32.totalorder %s27, 0
      %p90 = por %p88, %p89
      %p91 = scmp.ne.s32.totalorder %s79, %s80
      %p92 = scmp.eq.s32.totalorder %s28, 1
      %p93 = por %p91, %p92
      %p95 = scmp.ne.s32.totalorder %s80, %s94
      %p96 = scmp.eq.s32.totalorder %s28, 0
      %p97 = por %p95, %p96
      %s99 = sadd.s32 %s98, 1
      %p102 = scmp.eq.s32.totalorder %s22, 1
      %p103 = scmp.ne.s32.totalorder %s98, %s100
      %p104 = scmp.eq.s32.totalorder %s22, 0
      %p105 = por %p103, %p104
      %p106 = scmp.ne.s32.totalorder %s98, %s100
      %p107 = scmp.eq.s32.totalorder %s27, 1
      %p108 = por %p106, %p107
      %p109 = scmp.ne.s32.totalorder %s100, %s101
      %p110 = scmp.eq.s32.totalorder %s27, 0
      %p111 = por %p109, %p110
      %p112 = scmp.ne.s32.totalorder %s100, %s101
      %p113 = scmp.eq.s32.totalorder %s28, 1
      %p114 = por %p112, %p113
      %p116 = scmp.ne.s32.totalorder %s101, %s115
      %p117 = scmp.eq.s32.totalorder %s28, 0
      %p118 = por %p116, %p117
      %s120 = sadd.s32 %s119, 1
      %p123 = scmp.eq.s32.totalorder %s22, 1
      %p124 = scmp.ne.s32.totalorder %s119, %s121
      %p125 = scmp.eq.s32.totalorder %s22, 0
      %p126 = por %p124, %p125
      %p127 = scmp.ne.s32.totalorder %s119, %s121
      %p128 = scmp.eq.s32.totalorder %s27, 1
      %p129 = por %p127, %p128
      %p130 = scmp.ne.s32.totalorder %s121, %s122
      %p131 = scmp.eq.s32.totalorder %s27, 0
      %p132 = por %p130, %p131
      %p133 = scmp.ne.s32.totalorder %s121, %s122
      %p134 = scmp.eq.s32.totalorder %s28, 1
      %p135 = por %p133, %p134
      %p137 = scmp.ne.s32.totalorder %s122, %s136
      %p138 = scmp.eq.s32.totalorder %s28, 0
      %p139 = por %p137, %p138
      %s141 = sadd.s32 %s140, 1
      %p144 = scmp.eq.s32.totalorder %s22, 1
      %p145 = scmp.ne.s32.totalorder %s140, %s142
      %p146 = scmp.eq.s32.totalorder %s22, 0
      %p147 = por %p145, %p146
      %p148 = scmp.ne.s32.totalorder %s140, %s142
      %p149 = scmp.eq.s32.totalorder %s27, 1
      %p150 = por %p148, %p149
      %p151 = scmp.ne.s32.totalorder %s142, %s143
      %p152 = scmp.eq.s32.totalorder %s27, 0
      %p153 = por %p151, %p152
      %p154 = scmp.ne.s32.totalorder %s142, %s143
      %p155 = scmp.eq.s32.totalorder %s28, 1
      %p156 = por %p154, %p155
      %p158 = scmp.ne.s32.totalorder %s143, %s157
      %p159 = scmp.eq.s32.totalorder %s28, 0
      %p160 = por %p158, %p159
      %s162 = sadd.s32 %s161, 1
      %p165 = scmp.eq.s32.totalorder %s22, 1
      %p166 = scmp.ne.s32.totalorder %s161, %s163
      %p167 = scmp.eq.s32.totalorder %s22, 0
      %p168 = por %p166, %p167
      %p169 = scmp.ne.s32.totalorder %s161, %s163
      %p170 = scmp.eq.s32.totalorder %s27, 1
      %p171 = por %p169, %p170
      %p172 = scmp.ne.s32.totalorder %s163, %s164
      %p173 = scmp.eq.s32.totalorder %s27, 0
      %p174 = por %p172, %p173
      %p175 = scmp.ne.s32.totalorder %s163, %s164
      %p176 = scmp.eq.s32.totalorder %s28, 1
      %p177 = por %p175, %p176
      %p179 = scmp.ne.s32.totalorder %s164, %s178
      %p180 = scmp.eq.s32.totalorder %s28, 0
      %p181 = por %p179, %p180
      %s183 = sadd.s32 %s182, 1
      %p186 = scmp.eq.s32.totalorder %s22, 1
      %p187 = scmp.ne.s32.totalorder %s182, %s184
      %p188 = scmp.eq.s32.totalorder %s22, 0
      %p189 = por %p187, %p188
      %p190 = scmp.ne.s32.totalorder %s182, %s184
      %p191 = scmp.eq.s32.totalorder %s27, 1
      %p192 = por %p190, %p191
      %p193 = scmp.ne.s32.totalorder %s184, %s185
      %p194 = scmp.eq.s32.totalorder %s27, 0
      %p195 = por %p193, %p194
      %p196 = scmp.ne.s32.totalorder %s184, %s185
      %p197 = scmp.eq.s32.totalorder %s28, 1
      %p198 = por %p196, %p197
      %p200 = scmp.ne.s32.totalorder %s185, %s199
      %p201 = scmp.eq.s32.totalorder %s28, 0
      %p202 = por %p200, %p201
      %s204 = sadd.s32 %s203, 1
      %p207 = scmp.eq.s32.totalorder %s22, 1
      %p208 = scmp.ne.s32.totalorder %s203, %s205
      %p209 = scmp.eq.s32.totalorder %s22, 0
      %p210 = por %p208, %p209
      %p211 = scmp.ne.s32.totalorder %s203, %s205
      %p212 = scmp.eq.s32.totalorder %s27, 1
      %p213 = por %p211, %p212
      %p214 = scmp.ne.s32.totalorder %s205, %s206
      %p215 = scmp.eq.s32.totalorder %s27, 0
      %p216 = por %p214, %p215
      %p217 = scmp.ne.s32.totalorder %s205, %s206
      %p218 = scmp.eq.s32.totalorder %s28, 1
      %p219 = por %p217, %p218
      %p221 = scmp.ne.s32.totalorder %s206, %s220
      %p222 = scmp.eq.s32.totalorder %s28, 0
      %p223 = por %p221, %p222
      %s224 = ssub.s32 %s22, %s29
      %p225 = scmp.eq.s32.totalorder %s224, 0
      %s227 = sadd.s32 %s226, 1
      %s228 = scalar_select %p225, %s226, %s227
      %p231 = pneg %p225
      %p232 = scmp.eq.s32.totalorder %s22, 1
      %p233 = por %p231, %p232
      %p234 = scmp.ne.s32.totalorder %s226, %s229
      %p235 = scmp.eq.s32.totalorder %s22, 0
      %p236 = por %p234, %p235
      %p237 = scmp.ne.s32.totalorder %s226, %s229
      %p238 = scmp.eq.s32.totalorder %s27, 1
      %p239 = por %p237, %p238
      %p240 = scmp.ne.s32.totalorder %s229, %s230
      %p241 = scmp.eq.s32.totalorder %s27, 0
      %p242 = por %p240, %p241
      %p243 = scmp.ne.s32.totalorder %s229, %s230
      %p244 = scmp.eq.s32.totalorder %s28, 1
      %p245 = por %p243, %p244
      %p247 = scmp.ne.s32.totalorder %s230, %s246
      %p248 = scmp.eq.s32.totalorder %s28, 0
      %p249 = por %p247, %p248
      %p250 = scmp.le.s32.totalorder 1, %s22
      %p251 = scmp.lt.s32.totalorder %s22, 3
      %p252 = pnand %p250, %p251
      %p253 = pneg %p252
      // Predicated region
      $region9: #{tpu_custom_call.1} parent=5 // pred_check
        _
      $region10: #{tpu_custom_call.1} parent=5 // pred_check_branch
        %255 = sbr.rel (%p252) target = $region12
      $region11: #{tpu_custom_call.1} parent=5 // pred_region
        %s256 = ssub.s32 %s22, 1
        // Predicated region
        $region13: #{tpu_custom_call.1} parent=11 // pred_check
          %p257 = pneg %p69
        $region14: #{tpu_custom_call.1} parent=11 // pred_check_branch
          %259 = sbr.rel (%p257) target = $region16
        $region15: #{tpu_custom_call.1} parent=11 // pred_region
          _
        $region16: #{tpu_custom_call.1} parent=11 // pred_fallthru
          _
        // Predicated region
        $region17: #{tpu_custom_call.1} parent=11 // pred_check
          %p260 = pneg %p90
        $region18: #{tpu_custom_call.1} parent=11 // pred_check_branch
          %262 = sbr.rel (%p260) target = $region20
        $region19: #{tpu_custom_call.1} parent=11 // pred_region
          %264 = vsyncadd [#allocation4], 0
          %s265 = sshll.u32 %s2, 4
          %s266 = int_to_ptr.hbm [resolvable:$true] %s265
          %s267 = sshll.u32 [#allocation3], 4
          %s268 = int_to_ptr.vmem [resolvable:$true] %s267
          %273 = dma.hbm_to_vmem [thread:$0]  %s266, 4608, %s268, [#allocation4], 64, 64, 4
        $region20: #{tpu_custom_call.1} parent=11 // pred_fallthru
          _
        // Predicated region
        $region21: #{tpu_custom_call.1} parent=11 // pred_check
          %p274 = pneg %p111
        $region22: #{tpu_custom_call.1} parent=11 // pred_check_branch
          %276 = sbr.rel (%p274) target = $region24
        $region23: #{tpu_custom_call.1} parent=11 // pred_region
          _
        $region24: #{tpu_custom_call.1} parent=11 // pred_fallthru
          _
        // Predicated region
        $region25: #{tpu_custom_call.1} parent=11 // pred_check
          %p277 = pneg %p132
        $region26: #{tpu_custom_call.1} parent=11 // pred_check_branch
          %279 = sbr.rel (%p277) target = $region28
        $region27: #{tpu_custom_call.1} parent=11 // pred_region
          _
        $region28: #{tpu_custom_call.1} parent=11 // pred_fallthru
          _
        // Predicated region
        $region29: #{tpu_custom_call.1} parent=11 // pred_check
          %p280 = pneg %p153
        $region30: #{tpu_custom_call.1} parent=11 // pred_check_branch
          %282 = sbr.rel (%p280) target = $region32
        $region31: #{tpu_custom_call.1} parent=11 // pred_region
          %284 = vsyncadd [#allocation8], 0
          %s286 = sshll.u32 %s5, 4
          %s287 = int_to_ptr.hbm [resolvable:$true] %s286
          %s288 = sshll.u32 [#allocation7], 4
          %s289 = int_to_ptr.vmem [resolvable:$true] %s288
          %291 = dma.hbm_to_vmem [thread:$0]  %s287, 128, %s289, [#allocation8]
        $region32: #{tpu_custom_call.1} parent=11 // pred_fallthru
          _
        // Predicated region
        $region33: #{tpu_custom_call.1} parent=11 // pred_check
          %p292 = pneg %p174
        $region34: #{tpu_custom_call.1} parent=11 // pred_check_branch
          %294 = sbr.rel (%p292) target = $region36
        $region35: #{tpu_custom_call.1} parent=11 // pred_region
          _
        $region36: #{tpu_custom_call.1} parent=11 // pred_fallthru
          _
        // Predicated region
        $region37: #{tpu_custom_call.1} parent=11 // pred_check
          %p295 = pneg %p195
        $region38: #{tpu_custom_call.1} parent=11 // pred_check_branch
          %297 = sbr.rel (%p295) target = $region40
        $region39: #{tpu_custom_call.1} parent=11 // pred_region
          %299 = vsyncadd [#allocation6], 0
          %s301 = sshll.u32 %s7, 4
          %s302 = int_to_ptr.vmem [resolvable:$true] %s301
          %304 = dma.vmem_to_smem %s302, 16, [#allocation9], [#allocation6]
        $region40: #{tpu_custom_call.1} parent=11 // pred_fallthru
          _
        // Predicated region
        $region41: #{tpu_custom_call.1} parent=11 // pred_check
          %p305 = pneg %p216
        $region42: #{tpu_custom_call.1} parent=11 // pred_check_branch
          %307 = sbr.rel (%p305) target = $region44
        $region43: #{tpu_custom_call.1} parent=11 // pred_region
          _
        $region44: #{tpu_custom_call.1} parent=11 // pred_fallthru
          _
      $region12: #{tpu_custom_call.1} parent=5 // pred_fallthru
        _
      %p308 = scmp.lt.s32.totalorder %s22, 2
      // Predicated region
      $region45: #{tpu_custom_call.1} parent=5 // pred_check
        %p309 = pneg %p308
      $region46: #{tpu_custom_call.1} parent=5 // pred_check_branch
        %311 = sbr.rel (%p309) target = $region48
      $region47: #{tpu_custom_call.1} parent=5 // pred_region
        // Predicated region
        $region49: #{tpu_custom_call.1} parent=47 // pred_check
          %p312 = pneg %p42
        $region50: #{tpu_custom_call.1} parent=47 // pred_check_branch
          %314 = sbr.rel (%p312) target = $region52
        $region51: #{tpu_custom_call.1} parent=47 // pred_region
          %s315 = smul.u32 2, %s22
          %p316 = scmp.lt.s32.totalorder %s315, 3
          %s317 = scalar_select %p316, %s315, 3
          %s318 = smul.addr %s317, 8
          %s319 = scalar_lea.vmem %s0, %s318
          %s320 = smul.u32 2, %s22
        $region52: #{tpu_custom_call.1} parent=47 // pred_fallthru
          _
      $region48: #{tpu_custom_call.1} parent=5 // pred_fallthru
        _
      %p321 = scmp.le.s32.totalorder 1, %s22
      %p322 = scmp.lt.s32.totalorder %s22, 3
      %p323 = pnand %p321, %p322
      %p324 = pneg %p323
      // Predicated region
      $region53: #{tpu_custom_call.1} parent=5 // pred_check
        _
      $region54: #{tpu_custom_call.1} parent=5 // pred_check_branch
        %326 = sbr.rel (%p323) target = $region56
      $region55: #{tpu_custom_call.1} parent=5 // pred_region
        %s327 = ssub.s32 %s22, 1
        // Predicated region
        $region57: #{tpu_custom_call.1} parent=55 // pred_check
          %p328 = pneg %p90
        $region58: #{tpu_custom_call.1} parent=55 // pred_check_branch
          %330 = sbr.rel (%p328) target = $region60
        $region59: #{tpu_custom_call.1} parent=55 // pred_region
          %332 = dma.done [#allocation4], 4608
        $region60: #{tpu_custom_call.1} parent=55 // pred_fallthru
          _
        // Predicated region
        $region61: #{tpu_custom_call.1} parent=55 // pred_check
          %p333 = pneg %p153
        $region62: #{tpu_custom_call.1} parent=55 // pred_check_branch
          %335 = sbr.rel (%p333) target = $region64
        $region63: #{tpu_custom_call.1} parent=55 // pred_region
          %337 = dma.done [#allocation8], 128
        $region64: #{tpu_custom_call.1} parent=55 // pred_fallthru
          _
        // Predicated region
        $region65: #{tpu_custom_call.1} parent=55 // pred_check
          %p338 = pneg %p195
        $region66: #{tpu_custom_call.1} parent=55 // pred_check_branch
          %340 = sbr.rel (%p338) target = $region68
        $region67: #{tpu_custom_call.1} parent=55 // pred_region
          %342 = dma.done [#allocation6], 16
        $region68: #{tpu_custom_call.1} parent=55 // pred_fallthru
          _
        %343 = sfence
        %s344 = smul.u32 2, %s27
        %p345 = scmp.lt.s32.totalorder %s344, 3
        %s346 = scalar_select %p345, %s344, 3
        %s347 = smul.addr %s346, 8
        %s348 = scalar_lea.vmem %s0, %s347
        %p349 = pneg %p48
        %p350 = pneg %p45
        %p351 = pneg %p69
        %p352 = pneg %p66
        %p353 = pneg %p90
        %p354 = pneg %p87
        %p355 = pneg %p111
        %p356 = pneg %p108
        %p357 = pneg %p132
        %p358 = pneg %p129
        %p359 = pneg %p153
        %p360 = pneg %p150
        %p361 = pneg %p174
        %p362 = pneg %p171
        %p363 = pneg %p195
        %p364 = pneg %p192
        %p365 = pneg %p216
        %p366 = pneg %p213
        %p367 = pneg %p242
        %p368 = pneg %p239
        %s369 = sand.u32 %s229, 1
        %s370 = scalar_lea.sflag [#allocation5], %s369
        %s371 = sand.u32 %s229, 1
        %s372 = smul.addr %s371, 16
        %s373 = scalar_lea.vmem [#allocation10], %s372
        %s374 = smul.u32 2, %s27
        %p375 = scmp.lt.s32.totalorder %s374, 3
        %s376 = scalar_select %p375, %s374, 3
        %s377 = smul.addr %s376, 8
        %s378 = scalar_lea.vmem %s0, %s377
        %s379 = smul.u32 2, %s27
        %s380 = smul.u32 2, %s27
        %v382 = vld [vmem:[%s378] sm:$0xff]
        %v383 = vld [vmem:[%s378 + $0x8] sm:$0xff]
        %vm384 = vcmp.ge.f32.partialorder %v382, 1e-05
        %vm385 = vcmp.ge.f32.partialorder %v383, 1e-05
        %v386 = vsel %vm384, 1, 0
        %v387 = vsel %vm385, 1, 0
        %v388 = vcvt.s32.f32 %v386
        %v389 = vcvt.s32.f32 %v387
        %vm390 = vcmask 523264
        %v391 = vsel %vm390, %v388, 0.0
        %392 = vadd.xlane.f32.xlu0 %v391
        %v393 = vpop.xlane.xlu0 %392
        %v394 = vsel %vm390, %v389, 0.0
        %395 = vadd.xlane.f32.xlu0 %v394
        %v396 = vpop.xlane.xlu0 %395
        %v397 = vlaneseq
        %v398 = vshrl.u32 %v397, 7
        %v399 = vadd.s32 %v398, 8
        %vm400 = vcmp.lt.s32.totalorder %v398, 0
        %v401 = vsub.s32 0, %v398
        %v402 = vsel %vm400, %v401, %v398
        %v403 = vshrl.u32 %v402, 4
        %v404 = vand.u32 %v402, 15
        %v405 = vsub.s32 0, %v404
        %v406 = vsel %vm400, %v405, %v404
        %vm407 = vcmp.lt.s32.totalorder %v399, 0
        %v408 = vsub.s32 0, %v399
        %v409 = vsel %vm407, %v408, %v399
        %v410 = vshrl.u32 %v409, 4
        %v411 = vand.u32 %v409, 15
        %v412 = vsub.s32 0, %v411
        %v413 = vsel %vm407, %v412, %v411
        %vm414 = vcmp.ne.s32.totalorder %v406, 0
        %vm415 = vcmp.ne.s32.totalorder %v413, 0
        %vm416 = vcmp.lt.s32.totalorder %v406, 0
        %vm417 = vcmp.lt.s32.totalorder %v413, 0
        %vm418 = vmand %vm416, %vm414
        %vm419 = vmand %vm417, %vm415
        %v420 = vadd.s32 %v406, 16
        %v421 = vadd.s32 %v413, 16
        %v422 = vsel %vm418, %v420, %v406
        %v423 = vsel %vm419, %v421, %v413
        %v424 = vadd.s32 %v422, 4294967288
        %v425 = vadd.s32 %v423, 4294967288
        %vm426 = vcmp.ge.s32.totalorder %v424, 0
        %vm427 = vcmp.ge.s32.totalorder %v425, 0
        %vm428 = vcmp.lt.s32.totalorder %v424, 16
        %vm429 = vcmp.lt.s32.totalorder %v425, 16
        %vm430 = vmand %vm426, %vm428
        %vm431 = vmand %vm427, %vm429
        %v432 = vadd.s32 %v422, 4294967292
        %v433 = vadd.s32 %v423, 4294967292
        %vm434 = vcmp.ge.s32.totalorder %v432, 0
        %vm435 = vcmp.ge.s32.totalorder %v433, 0
        %vm436 = vcmp.lt.s32.totalorder %v432, 16
        %vm437 = vcmp.lt.s32.totalorder %v433, 16
        %vm438 = vmand %vm434, %vm436
        %vm439 = vmand %vm435, %vm437
        %v440 = vadd.s32 %v422, 4294967294
        %v441 = vadd.s32 %v423, 4294967294
        %vm442 = vcmp.ge.s32.totalorder %v440, 0
        %vm443 = vcmp.ge.s32.totalorder %v441, 0
        %vm444 = vcmp.lt.s32.totalorder %v440, 16
        %vm445 = vcmp.lt.s32.totalorder %v441, 16
        %vm446 = vmand %vm442, %vm444
        %vm447 = vmand %vm443, %vm445
        %v448 = vadd.s32 %v422, 4294967295
        %v449 = vadd.s32 %v423, 4294967295
        %vm450 = vcmp.ge.s32.totalorder %v448, 0
        %vm451 = vcmp.ge.s32.totalorder %v449, 0
        %vm452 = vcmp.lt.s32.totalorder %v448, 16
        %vm453 = vcmp.lt.s32.totalorder %v449, 16
        %vm454 = vmand %vm450, %vm452
        %vm455 = vmand %vm451, %vm453
        %v456 = vadd.s32 %v422, 1
        %v457 = vadd.s32 %v423, 1
        %vm458 = vcmp.ge.s32.totalorder %v456, 0
        %vm459 = vcmp.ge.s32.totalorder %v457, 0
        %vm460 = vcmp.lt.s32.totalorder %v456, 16
        %vm461 = vcmp.lt.s32.totalorder %v457, 16
        %vm462 = vmand %vm458, %vm460
        %vm463 = vmand %vm459, %vm461
        %v464 = vadd.s32 %v422, 2
        %v465 = vadd.s32 %v423, 2
        %vm466 = vcmp.ge.s32.totalorder %v464, 0
        %vm467 = vcmp.ge.s32.totalorder %v465, 0
        %vm468 = vcmp.lt.s32.totalorder %v464, 16
        %vm469 = vcmp.lt.s32.totalorder %v465, 16
        %vm470 = vmand %vm466, %vm468
        %vm471 = vmand %vm467, %vm469
        %v472 = vadd.s32 %v422, 4
        %v473 = vadd.s32 %v423, 4
        %vm474 = vcmp.ge.s32.totalorder %v472, 0
        %vm475 = vcmp.ge.s32.totalorder %v473, 0
        %vm476 = vcmp.lt.s32.totalorder %v472, 16
        %vm477 = vcmp.lt.s32.totalorder %v473, 16
        %vm478 = vmand %vm474, %vm476
        %vm479 = vmand %vm475, %vm477
        %v480 = vadd.s32 %v422, 8
        %v481 = vadd.s32 %v423, 8
        %vm482 = vcmp.ge.s32.totalorder %v480, 0
        %vm483 = vcmp.ge.s32.totalorder %v481, 0
        %vm484 = vcmp.lt.s32.totalorder %v480, 16
        %vm485 = vcmp.lt.s32.totalorder %v481, 16
        %vm486 = vmand %vm482, %vm484
        %vm487 = vmand %vm483, %vm485
        %v488 = vpack.c.bf16 %v383, %v382
        %v489 = vld [vmem:[%s1] sm:$0xf]
        %v490 = vld [vmem:[%s1 + $0x4] sm:$0xf]
        %v491 = vld [vmem:[%s1 + $0x8] sm:$0xf]
        %v492 = vld [vmem:[%s1 + $0xc] sm:$0xf]
        %v493 = vld [vmem:[%s1 + $0x10] sm:$0xf]
        %v494 = vld [vmem:[%s1 + $0x14] sm:$0xf]
        %v495 = vld [vmem:[%s1 + $0x18] sm:$0xf]
        %v496 = vld [vmem:[%s1 + $0x1c] sm:$0xf]
        %v505 = vunpack.c.l.b16 %v489
        %v506 = vunpack.c.l.b16 %v490
        %v507 = vunpack.c.l.b16 %v491
        %v508 = vunpack.c.l.b16 %v492
        %v509 = vunpack.c.l.b16 %v493
        %v510 = vunpack.c.l.b16 %v494
        %v511 = vunpack.c.l.b16 %v495
        %v512 = vunpack.c.l.b16 %v496
        %v513 = vpack.c.b16 %v506, %v505
        %v514 = vpack.c.b16 %v508, %v507
        %v515 = vpack.c.b16 %v510, %v509
        %v516 = vpack.c.b16 %v512, %v511
        %v522 = vsel %vm390, %v488, 0
        %524 = vmatpush.bf16.msra.mxu0 0
        %525 = vmatpush.bf16.msra.mxu0 0
        %526 = vmatpush.bf16.msra.mxu0 0
        %527 = vmatpush.bf16.msra.mxu0 0
        %528 = vmatpush.bf16.msra.mxu0 %v516
        %529 = vmatpush.bf16.msra.mxu0 %v515
        %530 = vmatpush.bf16.msra.mxu0 %v514
        %531 = vmatpush.bf16.msra.mxu0 %v513
        %532 = vmatmul.bf16.gmra.mxu0 %v522
        %v533 = vpop.f32.mrf.mxu0
        %v534 = vadd.f32 0.0, %v533
        %v535 = vpop.f32.mrf.mxu0
        %v536 = vadd.f32 0.0, %v535
        %537 = vdwg.mxu0
        %v538 = vrot.slane %v534, 7
        %v539 = vrot.slane %v536, 7
        %vm540 = vcmp.lt.s32.totalorder %v398, 1
        %v541 = vsel %vm540, %v538, %v539
        %v542 = vsel %vm540, %v539, %v538
        %v543 = vsel %vm454, %v542, 0.0
        %v544 = vsel %vm455, %v541, 0.0
        %v545 = vpack.c.bf16 %v544, %v543
        %v546 = vld [vmem:[#allocation3] sm:$0xf]
        %v547 = vld [vmem:[#allocation3 + $0x4] sm:$0xf]
        %v548 = vld [vmem:[#allocation3 + $0x8] sm:$0xf]
        %v549 = vld [vmem:[#allocation3 + $0xc] sm:$0xf]
        %v550 = vpack.c.bf16 %v536, %v534
        %s551 = scalar_lea.vmem [#allocation3], 16
        %v552 = vld [vmem:[%s551] sm:$0xf]
        %v553 = vld [vmem:[%s551 + $0x4] sm:$0xf]
        %v554 = vld [vmem:[%s551 + $0x8] sm:$0xf]
        %v555 = vld [vmem:[%s551 + $0xc] sm:$0xf]
        %v560 = vunpack.c.l.b16 %v552
        %v561 = vunpack.c.l.b16 %v553
        %v562 = vunpack.c.l.b16 %v554
        %v563 = vunpack.c.l.b16 %v555
        %v564 = vpack.c.b16 %v561, %v560
        %v565 = vpack.c.b16 %v563, %v562
        %vm568 = vcmask 261120
        %v570 = vsel %vm568, %v550, 0
        %572 = vmatpush.bf16.msra.mxu0 0
        %573 = vmatpush.bf16.msra.mxu0 0
        %574 = vmatpush.bf16.msra.mxu0 0
        %575 = vmatpush.bf16.msra.mxu0 0
        %576 = vmatpush.bf16.msra.mxu0 0
        %577 = vmatpush.bf16.msra.mxu0 0
        %578 = vmatpush.bf16.msra.mxu0 %v565
        %579 = vmatpush.bf16.msra.mxu0 %v564
        %580 = vmatmul.bf16.gmra.mxu0 %v570
        %v581 = vpop.f32.mrf.mxu0
        %v582 = vadd.f32 0.0, %v581
        %v583 = vpop.f32.mrf.mxu0
        %v584 = vadd.f32 0.0, %v583
        %585 = vdwg.mxu0
        %v590 = vunpack.c.l.b16 %v546
        %v591 = vunpack.c.l.b16 %v547
        %v592 = vunpack.c.l.b16 %v548
        %v593 = vunpack.c.l.b16 %v549
        %v594 = vpack.c.b16 %v591, %v590
        %v595 = vpack.c.b16 %v593, %v592
        %v599 = vsel %vm568, %v545, 0
        %601 = vmatpush.bf16.msra.mxu0 0
        %602 = vmatpush.bf16.msra.mxu0 0
        %603 = vmatpush.bf16.msra.mxu0 0
        %604 = vmatpush.bf16.msra.mxu0 0
        %605 = vmatpush.bf16.msra.mxu0 0
        %606 = vmatpush.bf16.msra.mxu0 0
        %607 = vmatpush.bf16.msra.mxu0 %v595
        %608 = vmatpush.bf16.msra.mxu0 %v594
        %609 = vmatmul.bf16.gmra.mxu0 %v599
        %v610 = vpop.f32.mrf.mxu0
        %v611 = vadd.f32 %v582, %v610
        %v612 = vpop.f32.mrf.mxu0
        %v613 = vadd.f32 %v584, %v612
        %614 = vdwg.mxu0
        %v615 = vrot.slane %v534, 1
        %v616 = vrot.slane %v536, 1
        %vm617 = vcmp.lt.s32.totalorder %v398, 7
        %v618 = vsel %vm617, %v615, %v616
        %v619 = vsel %vm617, %v616, %v615
        %v620 = vsel %vm462, %v618, 0.0
        %v621 = vsel %vm463, %v619, 0.0
        %v622 = vpack.c.bf16 %v621, %v620
        %s623 = scalar_lea.vmem [#allocation3], 32
        %v624 = vld [vmem:[%s623] sm:$0xf]
        %v625 = vld [vmem:[%s623 + $0x4] sm:$0xf]
        %v626 = vld [vmem:[%s623 + $0x8] sm:$0xf]
        %v627 = vld [vmem:[%s623 + $0xc] sm:$0xf]
        %v632 = vunpack.c.l.b16 %v624
        %v633 = vunpack.c.l.b16 %v625
        %v634 = vunpack.c.l.b16 %v626
        %v635 = vunpack.c.l.b16 %v627
        %v636 = vpack.c.b16 %v633, %v632
        %v637 = vpack.c.b16 %v635, %v634
        %v641 = vsel %vm568, %v622, 0
        %643 = vmatpush.bf16.msra.mxu0 0
        %644 = vmatpush.bf16.msra.mxu0 0
        %645 = vmatpush.bf16.msra.mxu0 0
        %646 = vmatpush.bf16.msra.mxu0 0
        %647 = vmatpush.bf16.msra.mxu0 0
        %648 = vmatpush.bf16.msra.mxu0 0
        %649 = vmatpush.bf16.msra.mxu0 %v637
        %650 = vmatpush.bf16.msra.mxu0 %v636
        %651 = vmatmul.bf16.gmra.mxu0 %v641
        %v652 = vpop.f32.mrf.mxu0
        %v653 = vadd.f32 0.0, %v652
        %v654 = vpop.f32.mrf.mxu0
        %v655 = vadd.f32 0.0, %v654
        %656 = vdwg.mxu0
        %v657 = vadd.f32 %v611, %v653
        %v658 = vadd.f32 %v613, %v655
        %v659 = vld [vmem:[%s3] sm:$0x1]
        %v660 = vperm.slane %v659, 0
        %v661 = vadd.f32 %v657, %v660
        %v662 = vadd.f32 %v658, %v660
        %v663 = vxor.u32 %v661, 2147483648
        %v664 = vxor.u32 %v662, 2147483648
        %v665 = vmul.f32 %v663, 1.442695
        %v666 = vpow.pop %v665
        %v667 = vmul.f32 %v664, 1.442695
        %v668 = vpow.pop %v667
        %v669 = vadd.f32 %v666, 1.0
        %v670 = vadd.f32 %v668, 1.0
        %v671 = vrcp.pop %v669
        %v672 = vmul.f32 %v669, %v671
        %v673 = vsub.f32 1.0, %v672
        %v674 = vmul.f32 %v671, %v673
        %v675 = vadd.f32 %v671, %v674
        %vm676 = vweird.f32 %v669
        %vm677 = vweird.f32 %v671
        %vm678 = vmor %vm676, %vm677
        %v679 = vsel %vm678, %v671, %v675
        %v680 = vand.u32 2147483647, %v669
        %vm681 = vcmp.eq.f32.partialorder %v680, 8.507059e+37
        %v682 = vand.u32 %v669, 2147483648
        %v683 = vor.u32 1.1754944e-38, %v682
        %v684 = vsel %vm681, %v683, %v679
        %v685 = vmul.f32 1.0, %v684
        %v686 = vrcp.pop %v670
        %v687 = vmul.f32 %v670, %v686
        %v688 = vsub.f32 1.0, %v687
        %v689 = vmul.f32 %v686, %v688
        %v690 = vadd.f32 %v686, %v689
        %vm691 = vweird.f32 %v670
        %vm692 = vweird.f32 %v686
        %vm693 = vmor %vm691, %vm692
        %v694 = vsel %vm693, %v686, %v690
        %v695 = vand.u32 2147483647, %v670
        %vm696 = vcmp.eq.f32.partialorder %v695, 8.507059e+37
        %v697 = vand.u32 %v670, 2147483648
        %v698 = vor.u32 1.1754944e-38, %v697
        %v699 = vsel %vm696, %v698, %v694
        %v700 = vmul.f32 1.0, %v699
        %703 = vrot.lane.b32.xlu0 %v685, 96
        %v704 = vpop.permute.xlu0 %703
        %705 = vrot.lane.b32.xlu0 %v700, 96
        %v706 = vpop.permute.xlu0 %705
        %v709 = vmul.f32 %v661, %v704
        %v710 = vmul.f32 %v662, %v706
        %v711 = vsel %vm568, %v709, 0.0
        %712 = vadd.xlane.f32.xlu0 %v711
        %v713 = vpop.xlane.xlu0 %712
        %v714 = vsel %vm568, %v710, 0.0
        %715 = vadd.xlane.f32.xlu0 %v714
        %v716 = vpop.xlane.xlu0 %715
        %v717 = vmul.f32 %v709, %v709
        %v718 = vmul.f32 %v710, %v710
        %v719 = vsel %vm568, %v717, 0.0
        %720 = vadd.xlane.f32.xlu0 %v719
        %v721 = vpop.xlane.xlu0 %720
        %v722 = vsel %vm568, %v718, 0.0
        %723 = vadd.xlane.f32.xlu0 %v722
        %v724 = vpop.xlane.xlu0 %723
        %v725 = vmul.f32 %v713, 0.03125
        %v726 = vmul.f32 %v716, 0.03125
        %v727 = vmul.f32 %v721, 0.03125
        %v728 = vmul.f32 %v724, 0.03125
        %v729 = vmul.f32 %v725, %v725
        %v730 = vmul.f32 %v726, %v726
        %v731 = vsub.f32 %v727, %v729
        %v732 = vsub.f32 %v728, %v730
        %v733 = vmax.f32 %v731, 0.0
        %v734 = vmax.f32 %v732, 0.0
        %v735 = vsub.f32 %v709, %v725
        %v736 = vsub.f32 %v710, %v726
        %v737 = vadd.f32 %v733, 1e-05
        %v738 = vadd.f32 %v734, 1e-05
        %v739 = vrsqrt.pop %v737
        %v740 = vmul.f32 %v739, %v737
        %v741 = vmul.f32 %v740, %v739
        %v742 = vmul.f32 0.5, %v741
        %v743 = vsub.f32 1.5, %v742
        %v744 = vmul.f32 %v739, %v743
        %vm745 = vweird.f32 %v737
        %vm746 = vweird.f32 %v739
        %vm747 = vmor %vm745, %vm746
        %v748 = vsel %vm747, %v739, %v744
        %v749 = vrsqrt.pop %v738
        %v750 = vmul.f32 %v749, %v738
        %v751 = vmul.f32 %v750, %v749
        %v752 = vmul.f32 0.5, %v751
        %v753 = vsub.f32 1.5, %v752
        %v754 = vmul.f32 %v749, %v753
        %vm755 = vweird.f32 %v738
        %vm756 = vweird.f32 %v749
        %vm757 = vmor %vm755, %vm756
        %v758 = vsel %vm757, %v749, %v754
        %v759 = vmul.f32 %v735, %v748
        %v760 = vmul.f32 %v736, %v758
        %v761 = vld [vmem:[%s4] sm:$0x1]
        %v762 = vperm.slane %v761, 0
        %v763 = vmul.f32 %v759, %v762
        %v764 = vmul.f32 %v760, %v762
        %v765 = vld [vmem:[#allocation7] sm:$0x1]
        %v766 = vperm.slane %v765, 0
        %v767 = vadd.f32 %v763, %v766
        %v768 = vadd.f32 %v764, %v766
        %s769 = sld [smem:[#allocation9]]
        %v770 = vstv %s769
        %v771 = vmul.f32 %v770, %v767
        %v772 = vmul.f32 %v770, %v768
        %v773 = vadd.f32 %v534, %v771
        %v774 = vadd.f32 %v536, %v772
        %v775 = vrot.slane %v773, 6
        %v776 = vrot.slane %v774, 6
        %vm777 = vcmp.lt.s32.totalorder %v398, 2
        %v778 = vsel %vm777, %v775, %v776
        %v779 = vsel %vm777, %v776, %v775
        %v780 = vsel %vm446, %v779, 0.0
        %v781 = vsel %vm447, %v778, 0.0
        %v782 = vpack.c.bf16 %v781, %v780
        %s783 = scalar_lea.vmem [#allocation3], 48
        %v784 = vld [vmem:[%s783] sm:$0xf]
        %v785 = vld [vmem:[%s783 + $0x4] sm:$0xf]
        %v786 = vld [vmem:[%s783 + $0x8] sm:$0xf]
        %v787 = vld [vmem:[%s783 + $0xc] sm:$0xf]
        %v788 = vpack.c.bf16 %v774, %v773
        %s789 = scalar_lea.vmem [#allocation3], 64
        %v790 = vld [vmem:[%s789] sm:$0xf]
        %v791 = vld [vmem:[%s789 + $0x4] sm:$0xf]
        %v792 = vld [vmem:[%s789 + $0x8] sm:$0xf]
        %v793 = vld [vmem:[%s789 + $0xc] sm:$0xf]
        %v798 = vunpack.c.l.b16 %v790
        %v799 = vunpack.c.l.b16 %v791
        %v800 = vunpack.c.l.b16 %v792
        %v801 = vunpack.c.l.b16 %v793
        %v802 = vpack.c.b16 %v799, %v798
        %v803 = vpack.c.b16 %v801, %v800
        %v807 = vsel %vm568, %v788, 0
        %809 = vmatpush.bf16.msra.mxu0 0
        %810 = vmatpush.bf16.msra.mxu0 0
        %811 = vmatpush.bf16.msra.mxu0 0
        %812 = vmatpush.bf16.msra.mxu0 0
        %813 = vmatpush.bf16.msra.mxu0 0
        %814 = vmatpush.bf16.msra.mxu0 0
        %815 = vmatpush.bf16.msra.mxu0 %v803
        %816 = vmatpush.bf16.msra.mxu0 %v802
        %817 = vmatmul.bf16.gmra.mxu0 %v807
        %v818 = vpop.f32.mrf.mxu0
        %v819 = vadd.f32 0.0, %v818
        %v820 = vpop.f32.mrf.mxu0
        %v821 = vadd.f32 0.0, %v820
        %822 = vdwg.mxu0
        %v827 = vunpack.c.l.b16 %v784
        %v828 = vunpack.c.l.b16 %v785
        %v829 = vunpack.c.l.b16 %v786
        %v830 = vunpack.c.l.b16 %v787
        %v831 = vpack.c.b16 %v828, %v827
        %v832 = vpack.c.b16 %v830, %v829
        %v836 = vsel %vm568, %v782, 0
        %838 = vmatpush.bf16.msra.mxu0 0
        %839 = vmatpush.bf16.msra.mxu0 0
        %840 = vmatpush.bf16.msra.mxu0 0
        %841 = vmatpush.bf16.msra.mxu0 0
        %842 = vmatpush.bf16.msra.mxu0 0
        %843 = vmatpush.bf16.msra.mxu0 0
        %844 = vmatpush.bf16.msra.mxu0 %v832
        %845 = vmatpush.bf16.msra.mxu0 %v831
        %846 = vmatmul.bf16.gmra.mxu0 %v836
        %v847 = vpop.f32.mrf.mxu0
        %v848 = vadd.f32 %v819, %v847
        %v849 = vpop.f32.mrf.mxu0
        %v850 = vadd.f32 %v821, %v849
        %851 = vdwg.mxu0
        %v852 = vrot.slane %v773, 2
        %v853 = vrot.slane %v774, 2
        %vm854 = vcmp.lt.s32.totalorder %v398, 6
        %v855 = vsel %vm854, %v852, %v853
        %v856 = vsel %vm854, %v853, %v852
        %v857 = vsel %vm470, %v855, 0.0
        %v858 = vsel %vm471, %v856, 0.0
        %v859 = vpack.c.bf16 %v858, %v857
        %s860 = scalar_lea.vmem [#allocation3], 80
        %v861 = vld [vmem:[%s860] sm:$0xf]
        %v862 = vld [vmem:[%s860 + $0x4] sm:$0xf]
        %v863 = vld [vmem:[%s860 + $0x8] sm:$0xf]
        %v864 = vld [vmem:[%s860 + $0xc] sm:$0xf]
        %v869 = vunpack.c.l.b16 %v861
        %v870 = vunpack.c.l.b16 %v862
        %v871 = vunpack.c.l.b16 %v863
        %v872 = vunpack.c.l.b16 %v864
        %v873 = vpack.c.b16 %v870, %v869
        %v874 = vpack.c.b16 %v872, %v871
        %v878 = vsel %vm568, %v859, 0
        %880 = vmatpush.bf16.msra.mxu0 0
        %881 = vmatpush.bf16.msra.mxu0 0
        %882 = vmatpush.bf16.msra.mxu0 0
        %883 = vmatpush.bf16.msra.mxu0 0
        %884 = vmatpush.bf16.msra.mxu0 0
        %885 = vmatpush.bf16.msra.mxu0 0
        %886 = vmatpush.bf16.msra.mxu0 %v874
        %887 = vmatpush.bf16.msra.mxu0 %v873
        %888 = vmatmul.bf16.gmra.mxu0 %v878
        %v889 = vpop.f32.mrf.mxu0
        %v890 = vadd.f32 0.0, %v889
        %v891 = vpop.f32.mrf.mxu0
        %v892 = vadd.f32 0.0, %v891
        %893 = vdwg.mxu0
        %v894 = vadd.f32 %v848, %v890
        %v895 = vadd.f32 %v850, %v892
        %v896 = vld [vmem:[%s3 + $0x1] sm:$0x1]
        %v897 = vperm.slane %v896, 0
        %v898 = vadd.f32 %v894, %v897
        %v899 = vadd.f32 %v895, %v897
        %v900 = vxor.u32 %v898, 2147483648
        %v901 = vxor.u32 %v899, 2147483648
        %v902 = vmul.f32 %v900, 1.442695
        %v903 = vpow.pop %v902
        %v904 = vmul.f32 %v901, 1.442695
        %v905 = vpow.pop %v904
        %v906 = vadd.f32 %v903, 1.0
        %v907 = vadd.f32 %v905, 1.0
        %v908 = vrcp.pop %v906
        %v909 = vmul.f32 %v906, %v908
        %v910 = vsub.f32 1.0, %v909
        %v911 = vmul.f32 %v908, %v910
        %v912 = vadd.f32 %v908, %v911
        %vm913 = vweird.f32 %v906
        %vm914 = vweird.f32 %v908
        %vm915 = vmor %vm913, %vm914
        %v916 = vsel %vm915, %v908, %v912
        %v917 = vand.u32 2147483647, %v906
        %vm918 = vcmp.eq.f32.partialorder %v917, 8.507059e+37
        %v919 = vand.u32 %v906, 2147483648
        %v920 = vor.u32 1.1754944e-38, %v919
        %v921 = vsel %vm918, %v920, %v916
        %v922 = vmul.f32 1.0, %v921
        %v923 = vrcp.pop %v907
        %v924 = vmul.f32 %v907, %v923
        %v925 = vsub.f32 1.0, %v924
        %v926 = vmul.f32 %v923, %v925
        %v927 = vadd.f32 %v923, %v926
        %vm928 = vweird.f32 %v907
        %vm929 = vweird.f32 %v923
        %vm930 = vmor %vm928, %vm929
        %v931 = vsel %vm930, %v923, %v927
        %v932 = vand.u32 2147483647, %v907
        %vm933 = vcmp.eq.f32.partialorder %v932, 8.507059e+37
        %v934 = vand.u32 %v907, 2147483648
        %v935 = vor.u32 1.1754944e-38, %v934
        %v936 = vsel %vm933, %v935, %v931
        %v937 = vmul.f32 1.0, %v936
        %940 = vrot.lane.b32.xlu0 %v922, 96
        %v941 = vpop.permute.xlu0 %940
        %942 = vrot.lane.b32.xlu0 %v937, 96
        %v943 = vpop.permute.xlu0 %942
        %v946 = vmul.f32 %v898, %v941
        %v947 = vmul.f32 %v899, %v943
        %v948 = vsel %vm568, %v946, 0.0
        %949 = vadd.xlane.f32.xlu0 %v948
        %v950 = vpop.xlane.xlu0 %949
        %v951 = vsel %vm568, %v947, 0.0
        %952 = vadd.xlane.f32.xlu0 %v951
        %v953 = vpop.xlane.xlu0 %952
        %v954 = vmul.f32 %v946, %v946
        %v955 = vmul.f32 %v947, %v947
        %v956 = vsel %vm568, %v954, 0.0
        %957 = vadd.xlane.f32.xlu0 %v956
        %v958 = vpop.xlane.xlu0 %957
        %v959 = vsel %vm568, %v955, 0.0
        %960 = vadd.xlane.f32.xlu0 %v959
        %v961 = vpop.xlane.xlu0 %960
        %v962 = vmul.f32 %v950, 0.03125
        %v963 = vmul.f32 %v953, 0.03125
        %v964 = vmul.f32 %v958, 0.03125
        %v965 = vmul.f32 %v961, 0.03125
        %v966 = vmul.f32 %v962, %v962
        %v967 = vmul.f32 %v963, %v963
        %v968 = vsub.f32 %v964, %v966
        %v969 = vsub.f32 %v965, %v967
        %v970 = vmax.f32 %v968, 0.0
        %v971 = vmax.f32 %v969, 0.0
        %v972 = vsub.f32 %v946, %v962
        %v973 = vsub.f32 %v947, %v963
        %v974 = vadd.f32 %v970, 1e-05
        %v975 = vadd.f32 %v971, 1e-05
        %v976 = vrsqrt.pop %v974
        %v977 = vmul.f32 %v976, %v974
        %v978 = vmul.f32 %v977, %v976
        %v979 = vmul.f32 0.5, %v978
        %v980 = vsub.f32 1.5, %v979
        %v981 = vmul.f32 %v976, %v980
        %vm982 = vweird.f32 %v974
        %vm983 = vweird.f32 %v976
        %vm984 = vmor %vm982, %vm983
        %v985 = vsel %vm984, %v976, %v981
        %v986 = vrsqrt.pop %v975
        %v987 = vmul.f32 %v986, %v975
        %v988 = vmul.f32 %v987, %v986
        %v989 = vmul.f32 0.5, %v988
        %v990 = vsub.f32 1.5, %v989
        %v991 = vmul.f32 %v986, %v990
        %vm992 = vweird.f32 %v975
        %vm993 = vweird.f32 %v986
        %vm994 = vmor %vm992, %vm993
        %v995 = vsel %vm994, %v986, %v991
        %v996 = vmul.f32 %v972, %v985
        %v997 = vmul.f32 %v973, %v995
        %v998 = vld [vmem:[%s4 + $0x1] sm:$0x1]
        %v999 = vperm.slane %v998, 0
        %v1000 = vmul.f32 %v996, %v999
        %v1001 = vmul.f32 %v997, %v999
        %v1002 = vld [vmem:[#allocation7 + $0x1] sm:$0x1]
        %v1003 = vperm.slane %v1002, 0
        %v1004 = vadd.f32 %v1000, %v1003
        %v1005 = vadd.f32 %v1001, %v1003
        %s1006 = sld [smem:[#allocation9 + $0x1]]
        %v1007 = vstv %s1006
        %v1008 = vmul.f32 %v1007, %v1004
        %v1009 = vmul.f32 %v1007, %v1005
        %v1010 = vadd.f32 %v773, %v1008
        %v1011 = vadd.f32 %v774, %v1009
        %v1012 = vrot.slane %v1010, 4
        %v1013 = vrot.slane %v1011, 4
        %vm1014 = vcmp.lt.s32.totalorder %v398, 4
        %v1015 = vsel %vm1014, %v1012, %v1013
        %v1016 = vsel %vm1014, %v1013, %v1012
        %v1017 = vsel %vm438, %v1016, 0.0
        %v1018 = vsel %vm439, %v1015, 0.0
        %v1019 = vpack.c.bf16 %v1018, %v1017
        %s1020 = scalar_lea.vmem [#allocation3], 96
        %v1021 = vld [vmem:[%s1020] sm:$0xf]
        %v1022 = vld [vmem:[%s1020 + $0x4] sm:$0xf]
        %v1023 = vld [vmem:[%s1020 + $0x8] sm:$0xf]
        %v1024 = vld [vmem:[%s1020 + $0xc] sm:$0xf]
        %v1025 = vpack.c.bf16 %v1011, %v1010
        %s1026 = scalar_lea.vmem [#allocation3], 112
        %v1027 = vld [vmem:[%s1026] sm:$0xf]
        %v1028 = vld [vmem:[%s1026 + $0x4] sm:$0xf]
        %v1029 = vld [vmem:[%s1026 + $0x8] sm:$0xf]
        %v1030 = vld [vmem:[%s1026 + $0xc] sm:$0xf]
        %v1035 = vunpack.c.l.b16 %v1027
        %v1036 = vunpack.c.l.b16 %v1028
        %v1037 = vunpack.c.l.b16 %v1029
        %v1038 = vunpack.c.l.b16 %v1030
        %v1039 = vpack.c.b16 %v1036, %v1035
        %v1040 = vpack.c.b16 %v1038, %v1037
        %v1044 = vsel %vm568, %v1025, 0
        %1046 = vmatpush.bf16.msra.mxu0 0
        %1047 = vmatpush.bf16.msra.mxu0 0
        %1048 = vmatpush.bf16.msra.mxu0 0
        %1049 = vmatpush.bf16.msra.mxu0 0
        %1050 = vmatpush.bf16.msra.mxu0 0
        %1051 = vmatpush.bf16.msra.mxu0 0
        %1052 = vmatpush.bf16.msra.mxu0 %v1040
        %1053 = vmatpush.bf16.msra.mxu0 %v1039
        %1054 = vmatmul.bf16.gmra.mxu0 %v1044
        %v1055 = vpop.f32.mrf.mxu0
        %v1056 = vadd.f32 0.0, %v1055
        %v1057 = vpop.f32.mrf.mxu0
        %v1058 = vadd.f32 0.0, %v1057
        %1059 = vdwg.mxu0
        %v1064 = vunpack.c.l.b16 %v1021
        %v1065 = vunpack.c.l.b16 %v1022
        %v1066 = vunpack.c.l.b16 %v1023
        %v1067 = vunpack.c.l.b16 %v1024
        %v1068 = vpack.c.b16 %v1065, %v1064
        %v1069 = vpack.c.b16 %v1067, %v1066
        %v1073 = vsel %vm568, %v1019, 0
        %1075 = vmatpush.bf16.msra.mxu0 0
        %1076 = vmatpush.bf16.msra.mxu0 0
        %1077 = vmatpush.bf16.msra.mxu0 0
        %1078 = vmatpush.bf16.msra.mxu0 0
        %1079 = vmatpush.bf16.msra.mxu0 0
        %1080 = vmatpush.bf16.msra.mxu0 0
        %1081 = vmatpush.bf16.msra.mxu0 %v1069
        %1082 = vmatpush.bf16.msra.mxu0 %v1068
        %1083 = vmatmul.bf16.gmra.mxu0 %v1073
        %v1084 = vpop.f32.mrf.mxu0
        %v1085 = vadd.f32 %v1056, %v1084
        %v1086 = vpop.f32.mrf.mxu0
        %v1087 = vadd.f32 %v1058, %v1086
        %1088 = vdwg.mxu0
        %v1089 = vsel %vm478, %v1015, 0.0
        %v1090 = vsel %vm479, %v1016, 0.0
        %v1091 = vpack.c.bf16 %v1090, %v1089
        %s1092 = scalar_lea.vmem [#allocation3], 128
        %v1093 = vld [vmem:[%s1092] sm:$0xf]
        %v1094 = vld [vmem:[%s1092 + $0x4] sm:$0xf]
        %v1095 = vld [vmem:[%s1092 + $0x8] sm:$0xf]
        %v1096 = vld [vmem:[%s1092 + $0xc] sm:$0xf]
        %v1101 = vunpack.c.l.b16 %v1093
        %v1102 = vunpack.c.l.b16 %v1094
        %v1103 = vunpack.c.l.b16 %v1095
        %v1104 = vunpack.c.l.b16 %v1096
        %v1105 = vpack.c.b16 %v1102, %v1101
        %v1106 = vpack.c.b16 %v1104, %v1103
        %v1110 = vsel %vm568, %v1091, 0
        %1112 = vmatpush.bf16.msra.mxu0 0
        %1113 = vmatpush.bf16.msra.mxu0 0
        %1114 = vmatpush.bf16.msra.mxu0 0
        %1115 = vmatpush.bf16.msra.mxu0 0
        %1116 = vmatpush.bf16.msra.mxu0 0
        %1117 = vmatpush.bf16.msra.mxu0 0
        %1118 = vmatpush.bf16.msra.mxu0 %v1106
        %1119 = vmatpush.bf16.msra.mxu0 %v1105
        %1120 = vmatmul.bf16.gmra.mxu0 %v1110
        %v1121 = vpop.f32.mrf.mxu0
        %v1122 = vadd.f32 0.0, %v1121
        %v1123 = vpop.f32.mrf.mxu0
        %v1124 = vadd.f32 0.0, %v1123
        %1125 = vdwg.mxu0
        %v1126 = vadd.f32 %v1085, %v1122
        %v1127 = vadd.f32 %v1087, %v1124
        %v1128 = vld [vmem:[%s3 + $0x2] sm:$0x1]
        %v1129 = vperm.slane %v1128, 0
        %v1130 = vadd.f32 %v1126, %v1129
        %v1131 = vadd.f32 %v1127, %v1129
        %v1132 = vxor.u32 %v1130, 2147483648
        %v1133 = vxor.u32 %v1131, 2147483648
        %v1134 = vmul.f32 %v1132, 1.442695
        %v1135 = vpow.pop %v1134
        %v1136 = vmul.f32 %v1133, 1.442695
        %v1137 = vpow.pop %v1136
        %v1138 = vadd.f32 %v1135, 1.0
        %v1139 = vadd.f32 %v1137, 1.0
        %v1140 = vrcp.pop %v1138
        %v1141 = vmul.f32 %v1138, %v1140
        %v1142 = vsub.f32 1.0, %v1141
        %v1143 = vmul.f32 %v1140, %v1142
        %v1144 = vadd.f32 %v1140, %v1143
        %vm1145 = vweird.f32 %v1138
        %vm1146 = vweird.f32 %v1140
        %vm1147 = vmor %vm1145, %vm1146
        %v1148 = vsel %vm1147, %v1140, %v1144
        %v1149 = vand.u32 2147483647, %v1138
        %vm1150 = vcmp.eq.f32.partialorder %v1149, 8.507059e+37
        %v1151 = vand.u32 %v1138, 2147483648
        %v1152 = vor.u32 1.1754944e-38, %v1151
        %v1153 = vsel %vm1150, %v1152, %v1148
        %v1154 = vmul.f32 1.0, %v1153
        %v1155 = vrcp.pop %v1139
        %v1156 = vmul.f32 %v1139, %v1155
        %v1157 = vsub.f32 1.0, %v1156
        %v1158 = vmul.f32 %v1155, %v1157
        %v1159 = vadd.f32 %v1155, %v1158
        %vm1160 = vweird.f32 %v1139
        %vm1161 = vweird.f32 %v1155
        %vm1162 = vmor %vm1160, %vm1161
        %v1163 = vsel %vm1162, %v1155, %v1159
        %v1164 = vand.u32 2147483647, %v1139
        %vm1165 = vcmp.eq.f32.partialorder %v1164, 8.507059e+37
        %v1166 = vand.u32 %v1139, 2147483648
        %v1167 = vor.u32 1.1754944e-38, %v1166
        %v1168 = vsel %vm1165, %v1167, %v1163
        %v1169 = vmul.f32 1.0, %v1168
        %1172 = vrot.lane.b32.xlu0 %v1154, 96
        %v1173 = vpop.permute.xlu0 %1172
        %1174 = vrot.lane.b32.xlu0 %v1169, 96
        %v1175 = vpop.permute.xlu0 %1174
        %v1178 = vmul.f32 %v1130, %v1173
        %v1179 = vmul.f32 %v1131, %v1175
        %v1180 = vsel %vm568, %v1178, 0.0
        %1181 = vadd.xlane.f32.xlu0 %v1180
        %v1182 = vpop.xlane.xlu0 %1181
        %v1183 = vsel %vm568, %v1179, 0.0
        %1184 = vadd.xlane.f32.xlu0 %v1183
        %v1185 = vpop.xlane.xlu0 %1184
        %v1186 = vmul.f32 %v1178, %v1178
        %v1187 = vmul.f32 %v1179, %v1179
        %v1188 = vsel %vm568, %v1186, 0.0
        %1189 = vadd.xlane.f32.xlu0 %v1188
        %v1190 = vpop.xlane.xlu0 %1189
        %v1191 = vsel %vm568, %v1187, 0.0
        %1192 = vadd.xlane.f32.xlu0 %v1191
        %v1193 = vpop.xlane.xlu0 %1192
        %v1194 = vmul.f32 %v1182, 0.03125
        %v1195 = vmul.f32 %v1185, 0.03125
        %v1196 = vmul.f32 %v1190, 0.03125
        %v1197 = vmul.f32 %v1193, 0.03125
        %v1198 = vmul.f32 %v1194, %v1194
        %v1199 = vmul.f32 %v1195, %v1195
        %v1200 = vsub.f32 %v1196, %v1198
        %v1201 = vsub.f32 %v1197, %v1199
        %v1202 = vmax.f32 %v1200, 0.0
        %v1203 = vmax.f32 %v1201, 0.0
        %v1204 = vsub.f32 %v1178, %v1194
        %v1205 = vsub.f32 %v1179, %v1195
        %v1206 = vadd.f32 %v1202, 1e-05
        %v1207 = vadd.f32 %v1203, 1e-05
        %v1208 = vrsqrt.pop %v1206
        %v1209 = vmul.f32 %v1208, %v1206
        %v1210 = vmul.f32 %v1209, %v1208
        %v1211 = vmul.f32 0.5, %v1210
        %v1212 = vsub.f32 1.5, %v1211
        %v1213 = vmul.f32 %v1208, %v1212
        %vm1214 = vweird.f32 %v1206
        %vm1215 = vweird.f32 %v1208
        %vm1216 = vmor %vm1214, %vm1215
        %v1217 = vsel %vm1216, %v1208, %v1213
        %v1218 = vrsqrt.pop %v1207
        %v1219 = vmul.f32 %v1218, %v1207
        %v1220 = vmul.f32 %v1219, %v1218
        %v1221 = vmul.f32 0.5, %v1220
        %v1222 = vsub.f32 1.5, %v1221
        %v1223 = vmul.f32 %v1218, %v1222
        %vm1224 = vweird.f32 %v1207
        %vm1225 = vweird.f32 %v1218
        %vm1226 = vmor %vm1224, %vm1225
        %v1227 = vsel %vm1226, %v1218, %v1223
        %v1228 = vmul.f32 %v1204, %v1217
        %v1229 = vmul.f32 %v1205, %v1227
        %v1230 = vld [vmem:[%s4 + $0x2] sm:$0x1]
        %v1231 = vperm.slane %v1230, 0
        %v1232 = vmul.f32 %v1228, %v1231
        %v1233 = vmul.f32 %v1229, %v1231
        %v1234 = vld [vmem:[#allocation7 + $0x2] sm:$0x1]
        %v1235 = vperm.slane %v1234, 0
        %v1236 = vadd.f32 %v1232, %v1235
        %v1237 = vadd.f32 %v1233, %v1235
        %s1238 = sld [smem:[#allocation9 + $0x2]]
        %v1239 = vstv %s1238
        %v1240 = vmul.f32 %v1239, %v1236
        %v1241 = vmul.f32 %v1239, %v1237
        %v1242 = vadd.f32 %v1010, %v1240
        %v1243 = vadd.f32 %v1011, %v1241
        %v1244 = vsel %vm430, %v1243, 0.0
        %v1245 = vsel %vm431, %v1242, 0.0
        %v1246 = vpack.c.bf16 %v1245, %v1244
        %s1247 = scalar_lea.vmem [#allocation3], 144
        %v1248 = vld [vmem:[%s1247] sm:$0xf]
        %v1249 = vld [vmem:[%s1247 + $0x4] sm:$0xf]
        %v1250 = vld [vmem:[%s1247 + $0x8] sm:$0xf]
        %v1251 = vld [vmem:[%s1247 + $0xc] sm:$0xf]
        %v1252 = vpack.c.bf16 %v1243, %v1242
        %s1253 = scalar_lea.vmem [#allocation3], 160
        %v1254 = vld [vmem:[%s1253] sm:$0xf]
        %v1255 = vld [vmem:[%s1253 + $0x4] sm:$0xf]
        %v1256 = vld [vmem:[%s1253 + $0x8] sm:$0xf]
        %v1257 = vld [vmem:[%s1253 + $0xc] sm:$0xf]
        %v1262 = vunpack.c.l.b16 %v1254
        %v1263 = vunpack.c.l.b16 %v1255
        %v1264 = vunpack.c.l.b16 %v1256
        %v1265 = vunpack.c.l.b16 %v1257
        %v1266 = vpack.c.b16 %v1263, %v1262
        %v1267 = vpack.c.b16 %v1265, %v1264
        %v1271 = vsel %vm568, %v1252, 0
        %1273 = vmatpush.bf16.msra.mxu0 0
        %1274 = vmatpush.bf16.msra.mxu0 0
        %1275 = vmatpush.bf16.msra.mxu0 0
        %1276 = vmatpush.bf16.msra.mxu0 0
        %1277 = vmatpush.bf16.msra.mxu0 0
        %1278 = vmatpush.bf16.msra.mxu0 0
        %1279 = vmatpush.bf16.msra.mxu0 %v1267
        %1280 = vmatpush.bf16.msra.mxu0 %v1266
        %1281 = vmatmul.bf16.gmra.mxu0 %v1271
        %v1282 = vpop.f32.mrf.mxu0
        %v1283 = vadd.f32 0.0, %v1282
        %v1284 = vpop.f32.mrf.mxu0
        %v1285 = vadd.f32 0.0, %v1284
        %1286 = vdwg.mxu0
        %v1291 = vunpack.c.l.b16 %v1248
        %v1292 = vunpack.c.l.b16 %v1249
        %v1293 = vunpack.c.l.b16 %v1250
        %v1294 = vunpack.c.l.b16 %v1251
        %v1295 = vpack.c.b16 %v1292, %v1291
        %v1296 = vpack.c.b16 %v1294, %v1293
        %v1300 = vsel %vm568, %v1246, 0
        %1302 = vmatpush.bf16.msra.mxu0 0
        %1303 = vmatpush.bf16.msra.mxu0 0
        %1304 = vmatpush.bf16.msra.mxu0 0
        %1305 = vmatpush.bf16.msra.mxu0 0
        %1306 = vmatpush.bf16.msra.mxu0 0
        %1307 = vmatpush.bf16.msra.mxu0 0
        %1308 = vmatpush.bf16.msra.mxu0 %v1296
        %1309 = vmatpush.bf16.msra.mxu0 %v1295
        %1310 = vmatmul.bf16.gmra.mxu0 %v1300
        %v1311 = vpop.f32.mrf.mxu0
        %v1312 = vadd.f32 %v1283, %v1311
        %v1313 = vpop.f32.mrf.mxu0
        %v1314 = vadd.f32 %v1285, %v1313
        %1315 = vdwg.mxu0
        %v1316 = vsel %vm486, %v1243, 0.0
        %v1317 = vsel %vm487, %v1242, 0.0
        %v1318 = vpack.c.bf16 %v1317, %v1316
        %s1319 = scalar_lea.vmem [#allocation3], 176
        %v1320 = vld [vmem:[%s1319] sm:$0xf]
        %v1321 = vld [vmem:[%s1319 + $0x4] sm:$0xf]
        %v1322 = vld [vmem:[%s1319 + $0x8] sm:$0xf]
        %v1323 = vld [vmem:[%s1319 + $0xc] sm:$0xf]
        %v1328 = vunpack.c.l.b16 %v1320
        %v1329 = vunpack.c.l.b16 %v1321
        %v1330 = vunpack.c.l.b16 %v1322
        %v1331 = vunpack.c.l.b16 %v1323
        %v1332 = vpack.c.b16 %v1329, %v1328
        %v1333 = vpack.c.b16 %v1331, %v1330
        %v1337 = vsel %vm568, %v1318, 0
        %1339 = vmatpush.bf16.msra.mxu0 0
        %1340 = vmatpush.bf16.msra.mxu0 0
        %1341 = vmatpush.bf16.msra.mxu0 0
        %1342 = vmatpush.bf16.msra.mxu0 0
        %1343 = vmatpush.bf16.msra.mxu0 0
        %1344 = vmatpush.bf16.msra.mxu0 0
        %1345 = vmatpush.bf16.msra.mxu0 %v1333
        %1346 = vmatpush.bf16.msra.mxu0 %v1332
        %1347 = vmatmul.bf16.gmra.mxu0 %v1337
        %v1348 = vpop.f32.mrf.mxu0
        %v1349 = vadd.f32 0.0, %v1348
        %v1350 = vpop.f32.mrf.mxu0
        %v1351 = vadd.f32 0.0, %v1350
        %1352 = vdwg.mxu0
        %v1353 = vadd.f32 %v1312, %v1349
        %v1354 = vadd.f32 %v1314, %v1351
        %v1355 = vld [vmem:[%s3 + $0x3] sm:$0x1]
        %v1356 = vperm.slane %v1355, 0
        %v1357 = vadd.f32 %v1353, %v1356
        %v1358 = vadd.f32 %v1354, %v1356
        %v1359 = vxor.u32 %v1357, 2147483648
        %v1360 = vxor.u32 %v1358, 2147483648
        %v1361 = vmul.f32 %v1359, 1.442695
        %v1362 = vpow.pop %v1361
        %v1363 = vmul.f32 %v1360, 1.442695
        %v1364 = vpow.pop %v1363
        %v1365 = vadd.f32 %v1362, 1.0
        %v1366 = vadd.f32 %v1364, 1.0
        %v1367 = vrcp.pop %v1365
        %v1368 = vmul.f32 %v1365, %v1367
        %v1369 = vsub.f32 1.0, %v1368
        %v1370 = vmul.f32 %v1367, %v1369
        %v1371 = vadd.f32 %v1367, %v1370
        %vm1372 = vweird.f32 %v1365
        %vm1373 = vweird.f32 %v1367
        %vm1374 = vmor %vm1372, %vm1373
        %v1375 = vsel %vm1374, %v1367, %v1371
        %v1376 = vand.u32 2147483647, %v1365
        %vm1377 = vcmp.eq.f32.partialorder %v1376, 8.507059e+37
        %v1378 = vand.u32 %v1365, 2147483648
        %v1379 = vor.u32 1.1754944e-38, %v1378
        %v1380 = vsel %vm1377, %v1379, %v1375
        %v1381 = vmul.f32 1.0, %v1380
        %v1382 = vrcp.pop %v1366
        %v1383 = vmul.f32 %v1366, %v1382
        %v1384 = vsub.f32 1.0, %v1383
        %v1385 = vmul.f32 %v1382, %v1384
        %v1386 = vadd.f32 %v1382, %v1385
        %vm1387 = vweird.f32 %v1366
        %vm1388 = vweird.f32 %v1382
        %vm1389 = vmor %vm1387, %vm1388
        %v1390 = vsel %vm1389, %v1382, %v1386
        %v1391 = vand.u32 2147483647, %v1366
        %vm1392 = vcmp.eq.f32.partialorder %v1391, 8.507059e+37
        %v1393 = vand.u32 %v1366, 2147483648
        %v1394 = vor.u32 1.1754944e-38, %v1393
        %v1395 = vsel %vm1392, %v1394, %v1390
        %v1396 = vmul.f32 1.0, %v1395
        %1399 = vrot.lane.b32.xlu0 %v1381, 96
        %v1400 = vpop.permute.xlu0 %1399
        %1401 = vrot.lane.b32.xlu0 %v1396, 96
        %v1402 = vpop.permute.xlu0 %1401
        %v1405 = vmul.f32 %v1357, %v1400
        %v1406 = vmul.f32 %v1358, %v1402
        %v1407 = vsel %vm568, %v1405, 0.0
        %1408 = vadd.xlane.f32.xlu0 %v1407
        %v1409 = vpop.xlane.xlu0 %1408
        %v1410 = vsel %vm568, %v1406, 0.0
        %1411 = vadd.xlane.f32.xlu0 %v1410
        %v1412 = vpop.xlane.xlu0 %1411
        %v1413 = vmul.f32 %v1405, %v1405
        %v1414 = vmul.f32 %v1406, %v1406
        %v1415 = vsel %vm568, %v1413, 0.0
        %1416 = vadd.xlane.f32.xlu0 %v1415
        %v1417 = vpop.xlane.xlu0 %1416
        %v1418 = vsel %vm568, %v1414, 0.0
        %1419 = vadd.xlane.f32.xlu0 %v1418
        %v1420 = vpop.xlane.xlu0 %1419
        %v1421 = vmul.f32 %v1409, 0.03125
        %v1422 = vmul.f32 %v1412, 0.03125
        %v1423 = vmul.f32 %v1417, 0.03125
        %v1424 = vmul.f32 %v1420, 0.03125
        %v1425 = vmul.f32 %v1421, %v1421
        %v1426 = vmul.f32 %v1422, %v1422
        %v1427 = vsub.f32 %v1423, %v1425
        %v1428 = vsub.f32 %v1424, %v1426
        %v1429 = vmax.f32 %v1427, 0.0
        %v1430 = vmax.f32 %v1428, 0.0
        %v1431 = vsub.f32 %v1405, %v1421
        %v1432 = vsub.f32 %v1406, %v1422
        %v1433 = vadd.f32 %v1429, 1e-05
        %v1434 = vadd.f32 %v1430, 1e-05
        %v1435 = vrsqrt.pop %v1433
        %v1436 = vmul.f32 %v1435, %v1433
        %v1437 = vmul.f32 %v1436, %v1435
        %v1438 = vmul.f32 0.5, %v1437
        %v1439 = vsub.f32 1.5, %v1438
        %v1440 = vmul.f32 %v1435, %v1439
        %vm1441 = vweird.f32 %v1433
        %vm1442 = vweird.f32 %v1435
        %vm1443 = vmor %vm1441, %vm1442
        %v1444 = vsel %vm1443, %v1435, %v1440
        %v1445 = vrsqrt.pop %v1434
        %v1446 = vmul.f32 %v1445, %v1434
        %v1447 = vmul.f32 %v1446, %v1445
        %v1448 = vmul.f32 0.5, %v1447
        %v1449 = vsub.f32 1.5, %v1448
        %v1450 = vmul.f32 %v1445, %v1449
        %vm1451 = vweird.f32 %v1434
        %vm1452 = vweird.f32 %v1445
        %vm1453 = vmor %vm1451, %vm1452
        %v1454 = vsel %vm1453, %v1445, %v1450
        %v1455 = vmul.f32 %v1431, %v1444
        %v1456 = vmul.f32 %v1432, %v1454
        %v1457 = vld [vmem:[%s4 + $0x3] sm:$0x1]
        %v1458 = vperm.slane %v1457, 0
        %v1459 = vmul.f32 %v1455, %v1458
        %v1460 = vmul.f32 %v1456, %v1458
        %v1461 = vld [vmem:[#allocation7 + $0x3] sm:$0x1]
        %v1462 = vperm.slane %v1461, 0
        %v1463 = vadd.f32 %v1459, %v1462
        %v1464 = vadd.f32 %v1460, %v1462
        %s1465 = sld [smem:[#allocation9 + $0x3]]
        %v1466 = vstv %s1465
        %v1467 = vmul.f32 %v1466, %v1463
        %v1468 = vmul.f32 %v1466, %v1464
        %v1469 = vadd.f32 %v1242, %v1467
        %v1470 = vadd.f32 %v1243, %v1468
        %v1471 = vrot.slane %v1469, 7
        %v1472 = vrot.slane %v1470, 7
        %v1473 = vsel %vm540, %v1471, %v1472
        %v1474 = vsel %vm540, %v1472, %v1471
        %v1475 = vsel %vm454, %v1474, 0.0
        %v1476 = vsel %vm455, %v1473, 0.0
        %v1477 = vpack.c.bf16 %v1476, %v1475
        %s1478 = scalar_lea.vmem [#allocation3], 192
        %v1479 = vld [vmem:[%s1478] sm:$0xf]
        %v1480 = vld [vmem:[%s1478 + $0x4] sm:$0xf]
        %v1481 = vld [vmem:[%s1478 + $0x8] sm:$0xf]
        %v1482 = vld [vmem:[%s1478 + $0xc] sm:$0xf]
        %v1483 = vpack.c.bf16 %v1470, %v1469
        %s1484 = scalar_lea.vmem [#allocation3], 208
        %v1485 = vld [vmem:[%s1484] sm:$0xf]
        %v1486 = vld [vmem:[%s1484 + $0x4] sm:$0xf]
        %v1487 = vld [vmem:[%s1484 + $0x8] sm:$0xf]
        %v1488 = vld [vmem:[%s1484 + $0xc] sm:$0xf]
        %v1493 = vunpack.c.l.b16 %v1485
        %v1494 = vunpack.c.l.b16 %v1486
        %v1495 = vunpack.c.l.b16 %v1487
        %v1496 = vunpack.c.l.b16 %v1488
        %v1497 = vpack.c.b16 %v1494, %v1493
        %v1498 = vpack.c.b16 %v1496, %v1495
        %v1502 = vsel %vm568, %v1483, 0
        %1504 = vmatpush.bf16.msra.mxu0 0
        %1505 = vmatpush.bf16.msra.mxu0 0
        %1506 = vmatpush.bf16.msra.mxu0 0
        %1507 = vmatpush.bf16.msra.mxu0 0
        %1508 = vmatpush.bf16.msra.mxu0 0
        %1509 = vmatpush.bf16.msra.mxu0 0
        %1510 = vmatpush.bf16.msra.mxu0 %v1498
        %1511 = vmatpush.bf16.msra.mxu0 %v1497
        %1512 = vmatmul.bf16.gmra.mxu0 %v1502
        %v1513 = vpop.f32.mrf.mxu0
        %v1514 = vadd.f32 0.0, %v1513
        %v1515 = vpop.f32.mrf.mxu0
        %v1516 = vadd.f32 0.0, %v1515
        %1517 = vdwg.mxu0
        %v1522 = vunpack.c.l.b16 %v1479
        %v1523 = vunpack.c.l.b16 %v1480
        %v1524 = vunpack.c.l.b16 %v1481
        %v1525 = vunpack.c.l.b16 %v1482
        %v1526 = vpack.c.b16 %v1523, %v1522
        %v1527 = vpack.c.b16 %v1525, %v1524
        %v1531 = vsel %vm568, %v1477, 0
        %1533 = vmatpush.bf16.msra.mxu0 0
        %1534 = vmatpush.bf16.msra.mxu0 0
        %1535 = vmatpush.bf16.msra.mxu0 0
        %1536 = vmatpush.bf16.msra.mxu0 0
        %1537 = vmatpush.bf16.msra.mxu0 0
        %1538 = vmatpush.bf16.msra.mxu0 0
        %1539 = vmatpush.bf16.msra.mxu0 %v1527
        %1540 = vmatpush.bf16.msra.mxu0 %v1526
        %1541 = vmatmul.bf16.gmra.mxu0 %v1531
        %v1542 = vpop.f32.mrf.mxu0
        %v1543 = vadd.f32 %v1514, %v1542
        %v1544 = vpop.f32.mrf.mxu0
        %v1545 = vadd.f32 %v1516, %v1544
        %1546 = vdwg.mxu0
        %v1547 = vrot.slane %v1469, 1
        %v1548 = vrot.slane %v1470, 1
        %v1549 = vsel %vm617, %v1547, %v1548
        %v1550 = vsel %vm617, %v1548, %v1547
        %v1551 = vsel %vm462, %v1549, 0.0
        %v1552 = vsel %vm463, %v1550, 0.0
        %v1553 = vpack.c.bf16 %v1552, %v1551
        %s1554 = scalar_lea.vmem [#allocation3], 224
        %v1555 = vld [vmem:[%s1554] sm:$0xf]
        %v1556 = vld [vmem:[%s1554 + $0x4] sm:$0xf]
        %v1557 = vld [vmem:[%s1554 + $0x8] sm:$0xf]
        %v1558 = vld [vmem:[%s1554 + $0xc] sm:$0xf]
        %v1563 = vunpack.c.l.b16 %v1555
        %v1564 = vunpack.c.l.b16 %v1556
        %v1565 = vunpack.c.l.b16 %v1557
        %v1566 = vunpack.c.l.b16 %v1558
        %v1567 = vpack.c.b16 %v1564, %v1563
        %v1568 = vpack.c.b16 %v1566, %v1565
        %v1572 = vsel %vm568, %v1553, 0
        %1574 = vmatpush.bf16.msra.mxu0 0
        %1575 = vmatpush.bf16.msra.mxu0 0
        %1576 = vmatpush.bf16.msra.mxu0 0
        %1577 = vmatpush.bf16.msra.mxu0 0
        %1578 = vmatpush.bf16.msra.mxu0 0
        %1579 = vmatpush.bf16.msra.mxu0 0
        %1580 = vmatpush.bf16.msra.mxu0 %v1568
        %1581 = vmatpush.bf16.msra.mxu0 %v1567
        %1582 = vmatmul.bf16.gmra.mxu0 %v1572
        %v1583 = vpop.f32.mrf.mxu0
        %v1584 = vadd.f32 0.0, %v1583
        %v1585 = vpop.f32.mrf.mxu0
        %v1586 = vadd.f32 0.0, %v1585
        %1587 = vdwg.mxu0
        %v1588 = vadd.f32 %v1543, %v1584
        %v1589 = vadd.f32 %v1545, %v1586
        %v1590 = vld [vmem:[%s3 + $0x4] sm:$0x1]
        %v1591 = vperm.slane %v1590, 0
        %v1592 = vadd.f32 %v1588, %v1591
        %v1593 = vadd.f32 %v1589, %v1591
        %v1594 = vxor.u32 %v1592, 2147483648
        %v1595 = vxor.u32 %v1593, 2147483648
        %v1596 = vmul.f32 %v1594, 1.442695
        %v1597 = vpow.pop %v1596
        %v1598 = vmul.f32 %v1595, 1.442695
        %v1599 = vpow.pop %v1598
        %v1600 = vadd.f32 %v1597, 1.0
        %v1601 = vadd.f32 %v1599, 1.0
        %v1602 = vrcp.pop %v1600
        %v1603 = vmul.f32 %v1600, %v1602
        %v1604 = vsub.f32 1.0, %v1603
        %v1605 = vmul.f32 %v1602, %v1604
        %v1606 = vadd.f32 %v1602, %v1605
        %vm1607 = vweird.f32 %v1600
        %vm1608 = vweird.f32 %v1602
        %vm1609 = vmor %vm1607, %vm1608
        %v1610 = vsel %vm1609, %v1602, %v1606
        %v1611 = vand.u32 2147483647, %v1600
        %vm1612 = vcmp.eq.f32.partialorder %v1611, 8.507059e+37
        %v1613 = vand.u32 %v1600, 2147483648
        %v1614 = vor.u32 1.1754944e-38, %v1613
        %v1615 = vsel %vm1612, %v1614, %v1610
        %v1616 = vmul.f32 1.0, %v1615
        %v1617 = vrcp.pop %v1601
        %v1618 = vmul.f32 %v1601, %v1617
        %v1619 = vsub.f32 1.0, %v1618
        %v1620 = vmul.f32 %v1617, %v1619
        %v1621 = vadd.f32 %v1617, %v1620
        %vm1622 = vweird.f32 %v1601
        %vm1623 = vweird.f32 %v1617
        %vm1624 = vmor %vm1622, %vm1623
        %v1625 = vsel %vm1624, %v1617, %v1621
        %v1626 = vand.u32 2147483647, %v1601
        %vm1627 = vcmp.eq.f32.partialorder %v1626, 8.507059e+37
        %v1628 = vand.u32 %v1601, 2147483648
        %v1629 = vor.u32 1.1754944e-38, %v1628
        %v1630 = vsel %vm1627, %v1629, %v1625
        %v1631 = vmul.f32 1.0, %v1630
        %1634 = vrot.lane.b32.xlu0 %v1616, 96
        %v1635 = vpop.permute.xlu0 %1634
        %1636 = vrot.lane.b32.xlu0 %v1631, 96
        %v1637 = vpop.permute.xlu0 %1636
        %v1640 = vmul.f32 %v1592, %v1635
        %v1641 = vmul.f32 %v1593, %v1637
        %v1642 = vsel %vm568, %v1640, 0.0
        %1643 = vadd.xlane.f32.xlu0 %v1642
        %v1644 = vpop.xlane.xlu0 %1643
        %v1645 = vsel %vm568, %v1641, 0.0
        %1646 = vadd.xlane.f32.xlu0 %v1645
        %v1647 = vpop.xlane.xlu0 %1646
        %v1648 = vmul.f32 %v1640, %v1640
        %v1649 = vmul.f32 %v1641, %v1641
        %v1650 = vsel %vm568, %v1648, 0.0
        %1651 = vadd.xlane.f32.xlu0 %v1650
        %v1652 = vpop.xlane.xlu0 %1651
        %v1653 = vsel %vm568, %v1649, 0.0
        %1654 = vadd.xlane.f32.xlu0 %v1653
        %v1655 = vpop.xlane.xlu0 %1654
        %v1656 = vmul.f32 %v1644, 0.03125
        %v1657 = vmul.f32 %v1647, 0.03125
        %v1658 = vmul.f32 %v1652, 0.03125
        %v1659 = vmul.f32 %v1655, 0.03125
        %v1660 = vmul.f32 %v1656, %v1656
        %v1661 = vmul.f32 %v1657, %v1657
        %v1662 = vsub.f32 %v1658, %v1660
        %v1663 = vsub.f32 %v1659, %v1661
        %v1664 = vmax.f32 %v1662, 0.0
        %v1665 = vmax.f32 %v1663, 0.0
        %v1666 = vsub.f32 %v1640, %v1656
        %v1667 = vsub.f32 %v1641, %v1657
        %v1668 = vadd.f32 %v1664, 1e-05
        %v1669 = vadd.f32 %v1665, 1e-05
        %v1670 = vrsqrt.pop %v1668
        %v1671 = vmul.f32 %v1670, %v1668
        %v1672 = vmul.f32 %v1671, %v1670
        %v1673 = vmul.f32 0.5, %v1672
        %v1674 = vsub.f32 1.5, %v1673
        %v1675 = vmul.f32 %v1670, %v1674
        %vm1676 = vweird.f32 %v1668
        %vm1677 = vweird.f32 %v1670
        %vm1678 = vmor %vm1676, %vm1677
        %v1679 = vsel %vm1678, %v1670, %v1675
        %v1680 = vrsqrt.pop %v1669
        %v1681 = vmul.f32 %v1680, %v1669
        %v1682 = vmul.f32 %v1681, %v1680
        %v1683 = vmul.f32 0.5, %v1682
        %v1684 = vsub.f32 1.5, %v1683
        %v1685 = vmul.f32 %v1680, %v1684
        %vm1686 = vweird.f32 %v1669
        %vm1687 = vweird.f32 %v1680
        %vm1688 = vmor %vm1686, %vm1687
        %v1689 = vsel %vm1688, %v1680, %v1685
        %v1690 = vmul.f32 %v1666, %v1679
        %v1691 = vmul.f32 %v1667, %v1689
        %v1692 = vld [vmem:[%s4 + $0x4] sm:$0x1]
        %v1693 = vperm.slane %v1692, 0
        %v1694 = vmul.f32 %v1690, %v1693
        %v1695 = vmul.f32 %v1691, %v1693
        %v1696 = vld [vmem:[#allocation7 + $0x4] sm:$0x1]
        %v1697 = vperm.slane %v1696, 0
        %v1698 = vadd.f32 %v1694, %v1697
        %v1699 = vadd.f32 %v1695, %v1697
        %s1700 = sld [smem:[#allocation9 + $0x4]]
        %v1701 = vstv %s1700
        %v1702 = vmul.f32 %v1701, %v1698
        %v1703 = vmul.f32 %v1701, %v1699
        %v1704 = vadd.f32 %v1469, %v1702
        %v1705 = vadd.f32 %v1470, %v1703
        %v1706 = vrot.slane %v1704, 7
        %v1707 = vrot.slane %v1705, 7
        %v1708 = vsel %vm540, %v1706, %v1707
        %v1709 = vsel %vm540, %v1707, %v1706
        %v1710 = vsel %vm454, %v1709, 0.0
        %v1711 = vsel %vm455, %v1708, 0.0
        %v1712 = vpack.c.bf16 %v1711, %v1710
        %s1713 = scalar_lea.vmem [#allocation3], 240
        %v1714 = vld [vmem:[%s1713] sm:$0xf]
        %v1715 = vld [vmem:[%s1713 + $0x4] sm:$0xf]
        %v1716 = vld [vmem:[%s1713 + $0x8] sm:$0xf]
        %v1717 = vld [vmem:[%s1713 + $0xc] sm:$0xf]
        %v1718 = vpack.c.bf16 %v1705, %v1704
        %s1719 = scalar_lea.vmem [#allocation3], 256
        %v1720 = vld [vmem:[%s1719] sm:$0xf]
        %v1721 = vld [vmem:[%s1719 + $0x4] sm:$0xf]
        %v1722 = vld [vmem:[%s1719 + $0x8] sm:$0xf]
        %v1723 = vld [vmem:[%s1719 + $0xc] sm:$0xf]
        %v1728 = vunpack.c.l.b16 %v1720
        %v1729 = vunpack.c.l.b16 %v1721
        %v1730 = vunpack.c.l.b16 %v1722
        %v1731 = vunpack.c.l.b16 %v1723
        %v1732 = vpack.c.b16 %v1729, %v1728
        %v1733 = vpack.c.b16 %v1731, %v1730
        %v1737 = vsel %vm568, %v1718, 0
        %1739 = vmatpush.bf16.msra.mxu0 0
        %1740 = vmatpush.bf16.msra.mxu0 0
        %1741 = vmatpush.bf16.msra.mxu0 0
        %1742 = vmatpush.bf16.msra.mxu0 0
        %1743 = vmatpush.bf16.msra.mxu0 0
        %1744 = vmatpush.bf16.msra.mxu0 0
        %1745 = vmatpush.bf16.msra.mxu0 %v1733
        %1746 = vmatpush.bf16.msra.mxu0 %v1732
        %1747 = vmatmul.bf16.gmra.mxu0 %v1737
        %v1748 = vpop.f32.mrf.mxu0
        %v1749 = vadd.f32 0.0, %v1748
        %v1750 = vpop.f32.mrf.mxu0
        %v1751 = vadd.f32 0.0, %v1750
        %1752 = vdwg.mxu0
        %v1757 = vunpack.c.l.b16 %v1714
        %v1758 = vunpack.c.l.b16 %v1715
        %v1759 = vunpack.c.l.b16 %v1716
        %v1760 = vunpack.c.l.b16 %v1717
        %v1761 = vpack.c.b16 %v1758, %v1757
        %v1762 = vpack.c.b16 %v1760, %v1759
        %v1766 = vsel %vm568, %v1712, 0
        %1768 = vmatpush.bf16.msra.mxu0 0
        %1769 = vmatpush.bf16.msra.mxu0 0
        %1770 = vmatpush.bf16.msra.mxu0 0
        %1771 = vmatpush.bf16.msra.mxu0 0
        %1772 = vmatpush.bf16.msra.mxu0 0
        %1773 = vmatpush.bf16.msra.mxu0 0
        %1774 = vmatpush.bf16.msra.mxu0 %v1762
        %1775 = vmatpush.bf16.msra.mxu0 %v1761
        %1776 = vmatmul.bf16.gmra.mxu0 %v1766
        %v1777 = vpop.f32.mrf.mxu0
        %v1778 = vadd.f32 %v1749, %v1777
        %v1779 = vpop.f32.mrf.mxu0
        %v1780 = vadd.f32 %v1751, %v1779
        %1781 = vdwg.mxu0
        %v1782 = vrot.slane %v1704, 1
        %v1783 = vrot.slane %v1705, 1
        %v1784 = vsel %vm617, %v1782, %v1783
        %v1785 = vsel %vm617, %v1783, %v1782
        %v1786 = vsel %vm462, %v1784, 0.0
        %v1787 = vsel %vm463, %v1785, 0.0
        %v1788 = vpack.c.bf16 %v1787, %v1786
        %s1789 = scalar_lea.vmem [#allocation3], 272
        %v1790 = vld [vmem:[%s1789] sm:$0xf]
        %v1791 = vld [vmem:[%s1789 + $0x4] sm:$0xf]
        %v1792 = vld [vmem:[%s1789 + $0x8] sm:$0xf]
        %v1793 = vld [vmem:[%s1789 + $0xc] sm:$0xf]
        %v1798 = vunpack.c.l.b16 %v1790
        %v1799 = vunpack.c.l.b16 %v1791
        %v1800 = vunpack.c.l.b16 %v1792
        %v1801 = vunpack.c.l.b16 %v1793
        %v1802 = vpack.c.b16 %v1799, %v1798
        %v1803 = vpack.c.b16 %v1801, %v1800
        %v1807 = vsel %vm568, %v1788, 0
        %1809 = vmatpush.bf16.msra.mxu0 0
        %1810 = vmatpush.bf16.msra.mxu0 0
        %1811 = vmatpush.bf16.msra.mxu0 0
        %1812 = vmatpush.bf16.msra.mxu0 0
        %1813 = vmatpush.bf16.msra.mxu0 0
        %1814 = vmatpush.bf16.msra.mxu0 0
        %1815 = vmatpush.bf16.msra.mxu0 %v1803
        %1816 = vmatpush.bf16.msra.mxu0 %v1802
        %1817 = vmatmul.bf16.gmra.mxu0 %v1807
        %v1818 = vpop.f32.mrf.mxu0
        %v1819 = vadd.f32 0.0, %v1818
        %v1820 = vpop.f32.mrf.mxu0
        %v1821 = vadd.f32 0.0, %v1820
        %1822 = vdwg.mxu0
        %v1823 = vadd.f32 %v1778, %v1819
        %v1824 = vadd.f32 %v1780, %v1821
        %v1825 = vld [vmem:[%s3 + $0x5] sm:$0x1]
        %v1826 = vperm.slane %v1825, 0
        %v1827 = vadd.f32 %v1823, %v1826
        %v1828 = vadd.f32 %v1824, %v1826
        %v1829 = vxor.u32 %v1827, 2147483648
        %v1830 = vxor.u32 %v1828, 2147483648
        %v1831 = vmul.f32 %v1829, 1.442695
        %v1832 = vpow.pop %v1831
        %v1833 = vmul.f32 %v1830, 1.442695
        %v1834 = vpow.pop %v1833
        %v1835 = vadd.f32 %v1832, 1.0
        %v1836 = vadd.f32 %v1834, 1.0
        %v1837 = vrcp.pop %v1835
        %v1838 = vmul.f32 %v1835, %v1837
        %v1839 = vsub.f32 1.0, %v1838
        %v1840 = vmul.f32 %v1837, %v1839
        %v1841 = vadd.f32 %v1837, %v1840
        %vm1842 = vweird.f32 %v1835
        %vm1843 = vweird.f32 %v1837
        %vm1844 = vmor %vm1842, %vm1843
        %v1845 = vsel %vm1844, %v1837, %v1841
        %v1846 = vand.u32 2147483647, %v1835
        %vm1847 = vcmp.eq.f32.partialorder %v1846, 8.507059e+37
        %v1848 = vand.u32 %v1835, 2147483648
        %v1849 = vor.u32 1.1754944e-38, %v1848
        %v1850 = vsel %vm1847, %v1849, %v1845
        %v1851 = vmul.f32 1.0, %v1850
        %v1852 = vrcp.pop %v1836
        %v1853 = vmul.f32 %v1836, %v1852
        %v1854 = vsub.f32 1.0, %v1853
        %v1855 = vmul.f32 %v1852, %v1854
        %v1856 = vadd.f32 %v1852, %v1855
        %vm1857 = vweird.f32 %v1836
        %vm1858 = vweird.f32 %v1852
        %vm1859 = vmor %vm1857, %vm1858
        %v1860 = vsel %vm1859, %v1852, %v1856
        %v1861 = vand.u32 2147483647, %v1836
        %vm1862 = vcmp.eq.f32.partialorder %v1861, 8.507059e+37
        %v1863 = vand.u32 %v1836, 2147483648
        %v1864 = vor.u32 1.1754944e-38, %v1863
        %v1865 = vsel %vm1862, %v1864, %v1860
        %v1866 = vmul.f32 1.0, %v1865
        %1869 = vrot.lane.b32.xlu0 %v1851, 96
        %v1870 = vpop.permute.xlu0 %1869
        %1871 = vrot.lane.b32.xlu0 %v1866, 96
        %v1872 = vpop.permute.xlu0 %1871
        %v1875 = vmul.f32 %v1827, %v1870
        %v1876 = vmul.f32 %v1828, %v1872
        %v1877 = vsel %vm568, %v1875, 0.0
        %1878 = vadd.xlane.f32.xlu0 %v1877
        %v1879 = vpop.xlane.xlu0 %1878
        %v1880 = vsel %vm568, %v1876, 0.0
        %1881 = vadd.xlane.f32.xlu0 %v1880
        %v1882 = vpop.xlane.xlu0 %1881
        %v1883 = vmul.f32 %v1875, %v1875
        %v1884 = vmul.f32 %v1876, %v1876
        %v1885 = vsel %vm568, %v1883, 0.0
        %1886 = vadd.xlane.f32.xlu0 %v1885
        %v1887 = vpop.xlane.xlu0 %1886
        %v1888 = vsel %vm568, %v1884, 0.0
        %1889 = vadd.xlane.f32.xlu0 %v1888
        %v1890 = vpop.xlane.xlu0 %1889
        %v1891 = vmul.f32 %v1879, 0.03125
        %v1892 = vmul.f32 %v1882, 0.03125
        %v1893 = vmul.f32 %v1887, 0.03125
        %v1894 = vmul.f32 %v1890, 0.03125
        %v1895 = vmul.f32 %v1891, %v1891
        %v1896 = vmul.f32 %v1892, %v1892
        %v1897 = vsub.f32 %v1893, %v1895
        %v1898 = vsub.f32 %v1894, %v1896
        %v1899 = vmax.f32 %v1897, 0.0
        %v1900 = vmax.f32 %v1898, 0.0
        %v1901 = vsub.f32 %v1875, %v1891
        %v1902 = vsub.f32 %v1876, %v1892
        %v1903 = vadd.f32 %v1899, 1e-05
        %v1904 = vadd.f32 %v1900, 1e-05
        %v1905 = vrsqrt.pop %v1903
        %v1906 = vmul.f32 %v1905, %v1903
        %v1907 = vmul.f32 %v1906, %v1905
        %v1908 = vmul.f32 0.5, %v1907
        %v1909 = vsub.f32 1.5, %v1908
        %v1910 = vmul.f32 %v1905, %v1909
        %vm1911 = vweird.f32 %v1903
        %vm1912 = vweird.f32 %v1905
        %vm1913 = vmor %vm1911, %vm1912
        %v1914 = vsel %vm1913, %v1905, %v1910
        %v1915 = vrsqrt.pop %v1904
        %v1916 = vmul.f32 %v1915, %v1904
        %v1917 = vmul.f32 %v1916, %v1915
        %v1918 = vmul.f32 0.5, %v1917
        %v1919 = vsub.f32 1.5, %v1918
        %v1920 = vmul.f32 %v1915, %v1919
        %vm1921 = vweird.f32 %v1904
        %vm1922 = vweird.f32 %v1915
        %vm1923 = vmor %vm1921, %vm1922
        %v1924 = vsel %vm1923, %v1915, %v1920
        %v1925 = vmul.f32 %v1901, %v1914
        %v1926 = vmul.f32 %v1902, %v1924
        %v1927 = vld [vmem:[%s4 + $0x5] sm:$0x1]
        %v1928 = vperm.slane %v1927, 0
        %v1929 = vmul.f32 %v1925, %v1928
        %v1930 = vmul.f32 %v1926, %v1928
        %v1931 = vld [vmem:[#allocation7 + $0x5] sm:$0x1]
        %v1932 = vperm.slane %v1931, 0
        %v1933 = vadd.f32 %v1929, %v1932
        %v1934 = vadd.f32 %v1930, %v1932
        %s1935 = sld [smem:[#allocation9 + $0x5]]
        %v1936 = vstv %s1935
        %v1937 = vmul.f32 %v1936, %v1933
        %v1938 = vmul.f32 %v1936, %v1934
        %v1939 = vadd.f32 %v1704, %v1937
        %v1940 = vadd.f32 %v1705, %v1938
        %v1941 = vld [vmem:[%s6] sm:$0x1]
        %v1943 = vperm.slane %v1941, 0
        %v1945 = vmul.f32 %v1939, %v1943
        %v1946 = vmul.f32 %v1940, %v1943
        %v1947 = vsel %vm568, %v1945, 0.0
        %1948 = vadd.xlane.f32.xlu0 %v1947
        %v1949 = vpop.xlane.xlu0 %1948
        %v1950 = vsel %vm568, %v1946, 0.0
        %1951 = vadd.xlane.f32.xlu0 %v1950
        %v1952 = vpop.xlane.xlu0 %1951
        %s1953 = sld [smem:[#allocation2]]
        %v1954 = vstv %s1953
        %v1955 = vadd.f32 %v1949, %v1954
        %v1956 = vadd.f32 %v1952, %v1954
        %v1957 = vxor.u32 %v1955, 2147483648
        %v1958 = vxor.u32 %v1956, 2147483648
        %v1959 = vmul.f32 %v1957, 1.442695
        %v1960 = vpow.pop %v1959
        %v1961 = vmul.f32 %v1958, 1.442695
        %v1962 = vpow.pop %v1961
        %v1963 = vadd.f32 %v1960, 1.0
        %v1964 = vadd.f32 %v1962, 1.0
        %v1965 = vrcp.pop %v1963
        %v1966 = vmul.f32 %v1963, %v1965
        %v1967 = vsub.f32 1.0, %v1966
        %v1968 = vmul.f32 %v1965, %v1967
        %v1969 = vadd.f32 %v1965, %v1968
        %vm1970 = vweird.f32 %v1963
        %vm1971 = vweird.f32 %v1965
        %vm1972 = vmor %vm1970, %vm1971
        %v1973 = vsel %vm1972, %v1965, %v1969
        %v1974 = vand.u32 2147483647, %v1963
        %vm1975 = vcmp.eq.f32.partialorder %v1974, 8.507059e+37
        %v1976 = vand.u32 %v1963, 2147483648
        %v1977 = vor.u32 1.1754944e-38, %v1976
        %v1978 = vsel %vm1975, %v1977, %v1973
        %v1979 = vmul.f32 1.0, %v1978
        %v1980 = vrcp.pop %v1964
        %v1981 = vmul.f32 %v1964, %v1980
        %v1982 = vsub.f32 1.0, %v1981
        %v1983 = vmul.f32 %v1980, %v1982
        %v1984 = vadd.f32 %v1980, %v1983
        %vm1985 = vweird.f32 %v1964
        %vm1986 = vweird.f32 %v1980
        %vm1987 = vmor %vm1985, %vm1986
        %v1988 = vsel %vm1987, %v1980, %v1984
        %v1989 = vand.u32 2147483647, %v1964
        %vm1990 = vcmp.eq.f32.partialorder %v1989, 8.507059e+37
        %v1991 = vand.u32 %v1964, 2147483648
        %v1992 = vor.u32 1.1754944e-38, %v1991
        %v1993 = vsel %vm1990, %v1992, %v1988
        %v1994 = vmul.f32 1.0, %v1993
        %v1995 = vlaneseq
        %v1996 = vand.u32 %v1995, 127
        %vm1997 = vcmp.eq.s32.totalorder %v1996, 0
        %vm1998 = vcmp.eq.s32.totalorder %v1996, 1
        %v1999 = vsel %vm1998, %v393, 0.0
        %v2000 = vsel %vm1998, %v396, 0.0
        %v2001 = vsel %vm1997, %v1979, %v1999
        %v2002 = vsel %vm1997, %v1994, %v2000
        %2003 = vst [vmem:[%s373] sm:$0xff] %v2001
        %2004 = vst [vmem:[%s373 + $0x8] sm:$0xff] %v2002
        %s2005 = sand.u32 %s229, 1
        %s2006 = scalar_lea.sflag [#allocation5], %s2005
        %s2007 = sand.u32 %s229, 1
        %s2008 = smul.addr %s2007, 16
        %s2009 = scalar_lea.vmem [#allocation10], %s2008
        // Predicated region
        $region69: #{tpu_custom_call.1} parent=55 // pred_check
          %p2010 = pneg %p239
        $region70: #{tpu_custom_call.1} parent=55 // pred_check_branch
          %2012 = sbr.rel (%p2010) target = $region72
        $region71: #{tpu_custom_call.1} parent=55 // pred_region
          %s2013 = smul.u32 2, %s27
          %2015 = vsyncadd %s2006, 0
          %s2016 = smul.addr %s2013, 8
          %s2017 = scalar_lea.hbm %s9, %s2016
          %s2018 = sshll.u32 %s2009, 4
          %s2019 = int_to_ptr.vmem [resolvable:$true] %s2018
          %s2020 = sshll.u32 %s2017, 4
          %s2021 = int_to_ptr.hbm [resolvable:$true] %s2020
          %2026 = dma.vmem_to_hbm [thread:$0]  %s2019, 256, %s2021, %s2006, 128, 128, 8
        $region72: #{tpu_custom_call.1} parent=55 // pred_fallthru
          _
      $region56: #{tpu_custom_call.1} parent=5 // pred_fallthru
        _
      %p2027 = scmp.le.s32.totalorder 2, %s22
      // Predicated region
      $region73: #{tpu_custom_call.1} parent=5 // pred_check
        %p2028 = pneg %p2027
      $region74: #{tpu_custom_call.1} parent=5 // pred_check_branch
        %2030 = sbr.rel (%p2028) target = $region76
      $region75: #{tpu_custom_call.1} parent=5 // pred_region
        %s2031 = ssub.s32 %s22, 2
        // Predicated region
        $region77: #{tpu_custom_call.1} parent=75 // pred_check
          %p2032 = pneg %p245
        $region78: #{tpu_custom_call.1} parent=75 // pred_check_branch
          %2034 = sbr.rel (%p2032) target = $region80
        $region79: #{tpu_custom_call.1} parent=75 // pred_region
          %s2035 = sand.u32 %s230, 1
          %s2036 = scalar_lea.sflag [#allocation5], %s2035
          %s2037 = sand.u32 %s230, 1
          %s2038 = smul.addr %s2037, 16
          %s2039 = scalar_lea.vmem [#allocation10], %s2038
          %2041 = dma.done %s2036, 256
        $region80: #{tpu_custom_call.1} parent=75 // pred_fallthru
          _
      $region76: #{tpu_custom_call.1} parent=5 // pred_fallthru
        _
    $region6: #{tpu_custom_call.1} parent=1 // loop_footer
      %s26 = sadd.s32 1, %s22
    $region7: #{tpu_custom_call.1} parent=1 // loop_footer_branch
      %21 = sbr.rel target = $region3
    $region8: #{tpu_custom_call.1} parent=1 // loop_exit
      _
    %2042 = vsyncpa [#allocation4], 1
    %s2043 = scalar_lea.sflag [#allocation4], 1
    %2044 = vsyncpa %s2043, 1
    %2045 = vsyncpa [#allocation8], 1
    %2046 = vsyncpa [#allocation5], 1
    %s2047 = scalar_lea.sflag [#allocation5], 1
    %2048 = vsyncpa %s2047, 1
    %2049 = vsyncpa [#allocation6], 1
    %s2050 = scalar_lea.sflag [#allocation6], 1
    %2051 = vsyncpa %s2050, 1

</llo_original>
